<compile_context>
chip_gen: v7x
topology: tpu7x:2x2x1
jax: 0.10.0
libtpu: 0.0.40
codegen_flags: <defaults>
</compile_context>

<pallas_src>
import functools
import math

import jax
import jax.numpy as jnp
from jax.experimental import pallas as pl
from jax.experimental.pallas import tpu as pltpu


def _round_up(x, m):
    return (x + m - 1) // m * m


def _vmem_padded_bytes(shape, dtype):
    """Bytes a tile of `shape` really occupies in VMEM (lane/sublane padding)."""
    itemsize = jnp.dtype(dtype).itemsize
    sublane = max(1, 32 // itemsize)          # 8 for f32, 16 for bf16
    dims = list(shape)
    dims[-1] = _round_up(dims[-1], 128)       # lanes
    if len(dims) >= 2:
        dims[-2] = _round_up(dims[-2], sublane)
    n = itemsize
    for d in dims:
        n *= d
    return n


def _vmem_budgets():
    """(tile budget, scoped vmem limit) chosen per TPU generation."""
    try:
        cap = pltpu.get_tpu_info().vmem_capacity_bytes
    except Exception:
        cap = 64 * 1024 * 1024                # assume smallest (v7x-class)
    if cap <= 64 * 1024 * 1024:               # v7x: 64 MiB physical VMEM
        return 18 * 1024 * 1024, 42 * 1024 * 1024
    return 24 * 1024 * 1024, 48 * 1024 * 1024  # v5e / v6e: 128 MiB physical


def _choose_block_h(H, W, p, C4, Cout4, K, cdtype, odtype, fuse_taps, budget):
    """Largest row-tile whose (padding-aware) VMEM footprint fits the budget."""
    Wp = W + 2 * p
    n_cols = _round_up(Cout4, 128)            # worst-case compute columns
    w_shape = (K * K * C4, n_cols) if fuse_taps else (K * K, C4, n_cols)

    def fits(th):
        M = th * W
        b = 2 * _vmem_padded_bytes((th + 2 * p, Wp, C4), cdtype)     # x, dbl-buf
        b += 2 * max(_vmem_padded_bytes((M, Cout4), odtype),
                     _vmem_padded_bytes((Cout4, M), odtype))         # out, dbl-buf
        b += _vmem_padded_bytes((M, n_cols), jnp.float32)            # accumulator
        if fuse_taps:
            b += 2 * _vmem_padded_bytes((M, K * K * C4), cdtype)     # im2col patch
        b += 2 * _vmem_padded_bytes(w_shape, cdtype)                 # fused weights
        b += 2 * _vmem_padded_bytes((1, n_cols), jnp.float32)        # bias
        return b <= budget

    # Prefer th with th*W % 128 == 0 (enables the lane-dense transposed store).
    if Cout4 < 128:
        q = 128 // math.gcd(W, 128)
        step = (8 * q) // math.gcd(8, q)      # lcm(8, q)
    else:
        step = 8
    if fits(H) or H <= step:
        return H                              # whole (padded) image per step
    best = step
    for t in range(2 * step, H + 1, step):
        if fits(t):
            best = t
        else:
            break
    return min(best, H)


def _p4p4_conv_kernel(x_ref, w_ref, b_ref, o_ref, *scratch, th, W, K, C4,
                      n_cols, out_cols, fuse_taps, transpose_out):
    # x_ref : (th + K - 1, W + K - 1, C4)  haloed channels-last input tile
    # w_ref : (K*K*C4, n_cols) if fuse_taps else (K*K, C4, n_cols)
    # b_ref : (1, n_cols) float32
    # o_ref : (out_cols, th*W) if transpose_out else (th*W, out_cols)
    M = th * W

    if fuse_taps:
        # In-kernel im2col: fold the K*K taps into the MXU contraction dim.
        # NOTE: the kw-offset slices imply a sublane relayout per tap; that
        # cost is accepted and hides under the (now well-filled) MXU matmul.
        taps = [x_ref[kh:kh + th, kw:kw + W, :]
                for kh in range(K) for kw in range(K)]
        patch = taps[0] if len(taps) == 1 else jnp.concatenate(taps, axis=-1)
        patch = patch.reshape(M, K * K * C4)
        acc = jnp.dot(patch, w_ref[...], preferred_element_type=jnp.float32)
        acc = acc + b_ref[...]
    else:
        # Large-C4 path: per-tap matmuls into an explicit f32 VMEM accumulator
        # seeded with the bias; weight taps are read as cheap ref slices.
        acc_ref, = scratch
        acc_ref[...] = jnp.broadcast_to(b_ref[...], (M, n_cols))
        for kh in range(K):
            for kw in range(K):
                tap = x_ref[kh:kh + th, kw:kw + W, :].reshape(M, C4)
                acc_ref[...] += jnp.dot(tap, w_ref[kh * K + kw],
                                        preferred_element_type=jnp.float32)
        acc = acc_ref[...]

    if transpose_out:
        # Lane-dense store: transpose the (M, 128k) accumulator once (XLU) and
        # keep the first out_cols rows; the store minor dim is th*W (multiple
        # of 128) -> unmasked vst instead of masked vst.msk on Cout4 lanes.
        acc_t = jnp.transpose(acc)                       # (n_cols, M)
        o_ref[...] = acc_t[:out_cols, :].astype(o_ref.dtype)
    else:
        o_ref[...] = acc.astype(o_ref.dtype)


def p4p4_gconv2d(x, weight, bias, *, compute_dtype=jnp.bfloat16, block_h=None):
    """P4->P4 group-equivariant conv2d forward.

    x: (N, Cin, 4, H, W); weight: (Cout, Cin*4, K, K); bias: (Cout,)
    Returns (N, Cout, 4, H, W), matching
        torch.stack([F.conv2d(x.view(N, Cin*4, H, W),
                              torch.rot90(weight, r, [2, 3]), bias,
                              padding='same') for r in range(4)], dim=2).

    NOTE: compute_dtype=bfloat16 (MXU-native, f32 accumulation) is the default
    fast path and is an explicit precision choice; pass
    compute_dtype=jnp.float32 to reproduce PyTorch's float32 numerics.
    """
    N, Cin, G, H, W = x.shape
    assert G == 4
    Cout, C4, K, K2 = weight.shape
    assert C4 == Cin * 4 and K == K2
    # TODO(synk): even kernel sizes need PyTorch's asymmetric 'same' padding.
    assert K % 2 == 1, "padding='same' implemented for odd kernel sizes"
    p = (K - 1) // 2
    Wp = W + 2 * p
    Cout4 = 4 * Cout
    out_dtype = x.dtype

    # Fold conv taps into the contraction dim when C4 would under-fill the MXU.
    fuse_taps = (C4 < 128) and (K * K * C4 <= 4096)

    budget, vmem_limit = _vmem_budgets()
    th = block_h if block_h is not None else _choose_block_h(
        H, W, p, C4, Cout4, K, compute_dtype, out_dtype, fuse_taps, budget)
    th = max(1, min(th, H))
    nH = -(-H // th)
    Ht = nH * th
    M = th * W

    # Lane-dense (transposed) store when Cout4 would be a masked minor dim;
    # pad the fused weight columns to 128 (free on the 128/256-wide MXU).
    transpose_out = (Cout4 < 128) and (M % 128 == 0)
    n_cols = _round_up(Cout4, 128) if transpose_out else Cout4

    # ---- Glue: NC4HW -> channels-last, zero 'same'-padded (read in place) ----
    x_nhwc = jnp.transpose(x.reshape(N, C4, H, W), (0, 2, 3, 1))
    x_pad = jnp.pad(x_nhwc, ((0, 0), (p, Ht - H + p), (p, p), (0, 0))
                    ).astype(compute_dtype)              # (N, Ht + 2p, Wp, C4)

    # ---- Glue: fuse the 4 spatial rotations along the output-channel axis ----
    w_rots = []
    for r in range(4):
        wr = jnp.rot90(weight, r, axes=(2, 3))           # (Cout, C4, K, K)
        wr = jnp.transpose(wr, (2, 3, 1, 0)).reshape(K * K, C4, Cout)
        w_rots.append(wr)
    w_all = jnp.stack(w_rots, axis=2).reshape(K * K, C4, Cout4)  # col = r*Cout+c
    b_all = jnp.tile(bias, 4).reshape(1, Cout4)
    if n_cols != Cout4:
        w_all = jnp.pad(w_all, ((0, 0), (0, 0), (0, n_cols - Cout4)))
        b_all = jnp.pad(b_all, ((0, 0), (0, n_cols - Cout4)))
    if fuse_taps:
        w_all = w_all.reshape(K * K * C4, n_cols)
    w_all = w_all.astype(compute_dtype)
    b_all = b_all.astype(jnp.float32)

    # ---- BlockSpecs ----------------------------------------------------------
    if nH == 1:
        # Whole padded image per grid step: read x_pad in place (no halo copy).
        x_spec = pl.BlockSpec((None, th + 2 * p, Wp, C4),
                              lambda n, i: (n, 0, 0, 0))
    else:
        # Overlapping row windows read straight from x_pad via element-offset
        # indexing on H: avoids materialising a halo-duplicated copy in HBM.
        # TODO(synk): if pl.Element windows are rejected by the local Mosaic
        # toolchain, fall back to stacking shifted row-tiles in the glue.
        x_spec = pl.BlockSpec((None, pl.Element(th + 2 * p), Wp, C4),
                              lambda n, i: (n, i * th, 0, 0))

    if fuse_taps:
        w_spec = pl.BlockSpec((K * K * C4, n_cols), lambda n, i: (0, 0))
    else:
        w_spec = pl.BlockSpec((K * K, C4, n_cols), lambda n, i: (0, 0, 0))
    b_spec = pl.BlockSpec((1, n_cols), lambda n, i: (0, 0))

    if transpose_out:
        out_shape = jax.ShapeDtypeStruct((N, nH, Cout4, M), out_dtype)
        out_spec = pl.BlockSpec((None, None, Cout4, M), lambda n, i: (n, i, 0, 0))
    else:
        out_shape = jax.ShapeDtypeStruct((N, nH, M, Cout4), out_dtype)
        out_spec = pl.BlockSpec((None, None, M, Cout4), lambda n, i: (n, i, 0, 0))

    scratch_shapes = [] if fuse_taps else [pltpu.VMEM((M, n_cols), jnp.float32)]

    kernel = functools.partial(
        _p4p4_conv_kernel, th=th, W=W, K=K, C4=C4, n_cols=n_cols,
        out_cols=Cout4, fuse_taps=fuse_taps, transpose_out=transpose_out)

    in_bytes = jnp.dtype(compute_dtype).itemsize
    out_bytes = jnp.dtype(out_dtype).itemsize
    flops = 2 * N * Ht * W * K * K * C4 * Cout4
    bytes_accessed = (N * (Ht + 2 * p) * Wp * C4 * in_bytes
                      + K * K * C4 * n_cols * in_bytes + n_cols * 4
                      + N * Ht * W * Cout4 * out_bytes)

    out = pl.pallas_call(
        kernel,
        out_shape=out_shape,
        grid_spec=pltpu.PrefetchScalarGridSpec(
            num_scalar_prefetch=0,
            grid=(N, nH),
            in_specs=[x_spec, w_spec, b_spec],
            out_specs=out_spec,
            scratch_shapes=scratch_shapes,
        ),
        compiler_params=pltpu.CompilerParams(
            dimension_semantics=("parallel", "parallel"),
            vmem_limit_bytes=vmem_limit),
        cost_estimate=pl.CostEstimate(flops=flops, transcendentals=0,
                                      bytes_accessed=bytes_accessed),
    )(x_pad, w_all, b_all)

    # ---- Glue: back to (N, Cout, 4, H, W)  (== torch.stack(outputs, dim=2)) --
    if transpose_out:
        out = out.reshape(N, nH, 4, Cout, th, W)
        out = jnp.transpose(out, (0, 3, 2, 1, 4, 5)).reshape(N, Cout, 4, Ht, W)
    else:
        out = out.reshape(N, nH, th, W, 4, Cout)
        out = jnp.transpose(out, (0, 5, 4, 1, 2, 3)).reshape(N, Cout, 4, Ht, W)
    return out[:, :, :, :H, :]


if __name__ == "__main__":
    key = jax.random.PRNGKey(0)
    k1, k2, k3 = jax.random.split(key, 3)
    N, Cin, Cout, H, W, K = 2, 4, 8, 16, 16, 3

    x = jax.random.normal(k1, (N, Cin, 4, H, W), dtype=jnp.float32)
    weight = jax.random.normal(k2, (Cout, Cin * 4, K, K), dtype=jnp.float32)
    bias = jax.random.normal(k3, (Cout,), dtype=jnp.float32)

    # Plain-JAX reference (matches F.conv2d padding='same' for odd K; jnp.rot90
    # and torch.rot90 share the same rotation convention).
    x2 = x.reshape(N, Cin * 4, H, W)
    refs = []
    for r in range(4):
        wr = jnp.rot90(weight, r, axes=(2, 3))
        o = jax.lax.conv_general_dilated(
            x2, wr, window_strides=(1, 1), padding="SAME",
            dimension_numbers=("NCHW", "OIHW", "NCHW"))
        refs.append(o + bias[None, :, None, None])
    ref = jnp.stack(refs, axis=2)

    # 1) Full-precision path: tight correctness check.
    out_f32 = jax.block_until_ready(
        p4p4_gconv2d(x, weight, bias, compute_dtype=jnp.float32))
    assert out_f32.shape == (N, Cout, 4, H, W), out_f32.shape
    assert jnp.allclose(out_f32, ref, rtol=1e-4, atol=1e-3), \
        float(jnp.max(jnp.abs(out_f32 - ref)))

    # 2) Default fast path: bf16 MXU operands, f32 accumulation (loose check).
    out_bf = jax.block_until_ready(p4p4_gconv2d(x, weight, bias))
    assert out_bf.shape == (N, Cout, 4, H, W), out_bf.shape
    err = float(jnp.max(jnp.abs(out_bf - ref)))
    scale = float(jnp.max(jnp.abs(ref)))
    assert err < 5e-2 * scale + 1e-2, (err, scale)

    print("KERNEL_OK")
</pallas_src>

<mosaic_0001>
module attributes {stable_mosaic.version = 11 : i64} {
  func.func @_p4p4_conv_kernel(%arg0: i32, %arg1: i32, %arg2: memref<1x18x18x16xf32, #tpu.memory_space<vmem>>, %arg3: memref<144x128xf32, #tpu.memory_space<vmem>>, %arg4: memref<1x128xf32, #tpu.memory_space<vmem>>, %arg5: memref<1x1x32x256xf32, #tpu.memory_space<vmem>>) attributes {dimension_semantics = [#tpu.dimension_semantics<parallel>, #tpu.dimension_semantics<parallel>], iteration_bounds = array<i64: 2, 1>, scalar_prefetch = 0 : i64, scratch_operands = 0 : i64, tpu.core_type = #tpu.core_type<tc>, window_params = [{transform_indices = @transform_0, window_bounds = array<i64: 1, 18, 18, 16>}, {pipeline_mode = #tpu.pipeline_mode<synchronous>, transform_indices = @transform_1, window_bounds = array<i64: 144, 128>}, {pipeline_mode = #tpu.pipeline_mode<synchronous>, transform_indices = @transform_2, window_bounds = array<i64: 1, 128>}, {transform_indices = @transform_3, window_bounds = array<i64: 1, 1, 32, 256>}]} {
    %c0 = arith.constant 0 : index
    %c0_0 = arith.constant 0 : index
    %c0_1 = arith.constant 0 : index
    %c0_2 = arith.constant 0 : index
    %0 = vector.load %arg2[%c0, %c0_0, %c0_1, %c0_2] : memref<1x18x18x16xf32, #tpu.memory_space<vmem>>, vector<1x16x16x16xf32>
    %1 = vector.shape_cast %0 : vector<1x16x16x16xf32> to vector<16x16x16xf32>
    %c0_3 = arith.constant 0 : index
    %c0_4 = arith.constant 0 : index
    %c1 = arith.constant 1 : index
    %c0_5 = arith.constant 0 : index
    %2 = vector.load %arg2[%c0_3, %c0_4, %c1, %c0_5] : memref<1x18x18x16xf32, #tpu.memory_space<vmem>>, vector<1x16x16x16xf32>
    %3 = vector.shape_cast %2 : vector<1x16x16x16xf32> to vector<16x16x16xf32>
    %c0_6 = arith.constant 0 : index
    %c0_7 = arith.constant 0 : index
    %c2 = arith.constant 2 : index
    %c0_8 = arith.constant 0 : index
    %4 = vector.load %arg2[%c0_6, %c0_7, %c2, %c0_8] : memref<1x18x18x16xf32, #tpu.memory_space<vmem>>, vector<1x16x16x16xf32>
    %5 = vector.shape_cast %4 : vector<1x16x16x16xf32> to vector<16x16x16xf32>
    %c0_9 = arith.constant 0 : index
    %c1_10 = arith.constant 1 : index
    %c0_11 = arith.constant 0 : index
    %c0_12 = arith.constant 0 : index
    %6 = vector.load %arg2[%c0_9, %c1_10, %c0_11, %c0_12] : memref<1x18x18x16xf32, #tpu.memory_space<vmem>>, vector<1x16x16x16xf32>
    %7 = vector.shape_cast %6 : vector<1x16x16x16xf32> to vector<16x16x16xf32>
    %c0_13 = arith.constant 0 : index
    %c1_14 = arith.constant 1 : index
    %c1_15 = arith.constant 1 : index
    %c0_16 = arith.constant 0 : index
    %8 = vector.load %arg2[%c0_13, %c1_14, %c1_15, %c0_16] : memref<1x18x18x16xf32, #tpu.memory_space<vmem>>, vector<1x16x16x16xf32>
    %9 = vector.shape_cast %8 : vector<1x16x16x16xf32> to vector<16x16x16xf32>
    %c0_17 = arith.constant 0 : index
    %c1_18 = arith.constant 1 : index
    %c2_19 = arith.constant 2 : index
    %c0_20 = arith.constant 0 : index
    %10 = vector.load %arg2[%c0_17, %c1_18, %c2_19, %c0_20] : memref<1x18x18x16xf32, #tpu.memory_space<vmem>>, vector<1x16x16x16xf32>
    %11 = vector.shape_cast %10 : vector<1x16x16x16xf32> to vector<16x16x16xf32>
    %c0_21 = arith.constant 0 : index
    %c2_22 = arith.constant 2 : index
    %c0_23 = arith.constant 0 : index
    %c0_24 = arith.constant 0 : index
    %12 = vector.load %arg2[%c0_21, %c2_22, %c0_23, %c0_24] : memref<1x18x18x16xf32, #tpu.memory_space<vmem>>, vector<1x16x16x16xf32>
    %13 = vector.shape_cast %12 : vector<1x16x16x16xf32> to vector<16x16x16xf32>
    %c0_25 = arith.constant 0 : index
    %c2_26 = arith.constant 2 : index
    %c1_27 = arith.constant 1 : index
    %c0_28 = arith.constant 0 : index
    %14 = vector.load %arg2[%c0_25, %c2_26, %c1_27, %c0_28] : memref<1x18x18x16xf32, #tpu.memory_space<vmem>>, vector<1x16x16x16xf32>
    %15 = vector.shape_cast %14 : vector<1x16x16x16xf32> to vector<16x16x16xf32>
    %c0_29 = arith.constant 0 : index
    %c2_30 = arith.constant 2 : index
    %c2_31 = arith.constant 2 : index
    %c0_32 = arith.constant 0 : index
    %16 = vector.load %arg2[%c0_29, %c2_30, %c2_31, %c0_32] : memref<1x18x18x16xf32, #tpu.memory_space<vmem>>, vector<1x16x16x16xf32>
    %17 = vector.shape_cast %16 : vector<1x16x16x16xf32> to vector<16x16x16xf32>
    %18 = tpu.concatenate %1, %3, %5, %7, %9, %11, %13, %15, %17 in 2 : vector<16x16x16xf32>, vector<16x16x16xf32>, vector<16x16x16xf32>, vector<16x16x16xf32>, vector<16x16x16xf32>, vector<16x16x16xf32>, vector<16x16x16xf32>, vector<16x16x16xf32>, vector<16x16x16xf32> -> vector<16x16x144xf32>
    %19 = vector.shape_cast %18 : vector<16x16x144xf32> to vector<256x144xf32>
    %c0_33 = arith.constant 0 : index
    %c0_34 = arith.constant 0 : index
    %20 = vector.load %arg3[%c0_33, %c0_34] : memref<144x128xf32, #tpu.memory_space<vmem>>, vector<144x128xf32>
    %cst = arith.constant dense<0.000000e+00> : vector<256x128xf32>
    %21 = tpu.matmul %19, %20, %cst {dimension_numbers = #tpu.dot_dimension_numbers<[1], [0], [0], [1], [0, 0, 1, 1], [], []>} : vector<256x144xf32>, vector<144x128xf32>, vector<256x128xf32> -> vector<256x128xf32>
    %c0_35 = arith.constant 0 : index
    %c0_36 = arith.constant 0 : index
    %22 = vector.load %arg4[%c0_35, %c0_36] : memref<1x128xf32, #tpu.memory_space<vmem>>, vector<1x128xf32>
    %23 = vector.broadcast %22 : vector<1x128xf32> to vector<256x128xf32>
    %24 = arith.addf %21, %23 : vector<256x128xf32>
    %25 = tpu.transpose %24, [1, 0] : vector<256x128xf32> -> vector<128x256xf32>
    %26 = vector.extract_strided_slice %25 {offsets = [0, 0], sizes = [32, 256], strides = [1, 1]} : vector<128x256xf32> to vector<32x256xf32>
    %c0_37 = arith.constant 0 : index
    %c0_38 = arith.constant 0 : index
    %c0_39 = arith.constant 0 : index
    %c0_40 = arith.constant 0 : index
    %27 = vector.load %arg5[%c0_37, %c0_38, %c0_39, %c0_40] : memref<1x1x32x256xf32, #tpu.memory_space<vmem>>, vector<1x1x32x256xf32>
    %28 = vector.shape_cast %27 : vector<1x1x32x256xf32> to vector<32x256xf32>
    %29 = vector.shape_cast %26 : vector<32x256xf32> to vector<1x1x32x256xf32>
    tpu.vector_store %arg5[%c0_37, %c0_38, %c0_39, %c0_40], %29 {strides = array<i32>} : memref<1x1x32x256xf32, #tpu.memory_space<vmem>>, vector<1x1x32x256xf32>,
    return
  }
  func.func @transform_0(%arg0: i32, %arg1: i32) -> (i32, i32, i32, i32) {
    %c0_i32 = arith.constant 0 : i32
    %c0_i32_0 = arith.constant 0 : i32
    %c0_i32_1 = arith.constant 0 : i32
    %c0_i32_2 = arith.constant 0 : i32
    return %arg0, %c0_i32, %c0_i32_0, %c0_i32_1 : i32, i32, i32, i32
  }
  func.func @transform_1(%arg0: i32, %arg1: i32) -> (i32, i32) {
    %c0_i32 = arith.constant 0 : i32
    %c0_i32_0 = arith.constant 0 : i32
    %c0_i32_1 = arith.constant 0 : i32
    return %c0_i32, %c0_i32_0 : i32, i32
  }
  func.func @transform_2(%arg0: i32, %arg1: i32) -> (i32, i32) {
    %c0_i32 = arith.constant 0 : i32
    %c0_i32_0 = arith.constant 0 : i32
    %c0_i32_1 = arith.constant 0 : i32
    return %c0_i32, %c0_i32_0 : i32, i32
  }
  func.func @transform_3(%arg0: i32, %arg1: i32) -> (i32, i32, i32, i32) {
    %c0_i32 = arith.constant 0 : i32
    %c0_i32_0 = arith.constant 0 : i32
    %c0_i32_1 = arith.constant 0 : i32
    return %arg0, %arg1, %c0_i32, %c0_i32_0 : i32, i32, i32, i32
  }
}

</mosaic_0001>

<llo_original>
// kernel: tpu_custom_call.1
$region0: #{tpu_custom_call.1}
  #allocation0 [shape = 'u32[]', space=smem, size = 0x4, offset = 0x4, fixed_abs, tag = 'smem constant byte address 0x4 - core index']
  #allocation1 [shape = 'u32[144,128]{1,0:T(1,128)}', space=vmem, size = 0x12000, scoped, tag = 'internal scratch']
  %s0 = inlined_call_operand.vmem [shape: f32[2,18,18,16], index: 0, kind: input, shape index: {}]
  %s1 = inlined_call_operand.vmem [shape: f32[144,128], index: 1, kind: input, shape index: {}]
  %s2 = inlined_call_operand.vmem [shape: f32[1,128], index: 2, kind: input, shape index: {}]
  %s3 = inlined_call_operand.hbm [shape: f32[2,1,32,256], index: 3, kind: output, shape index: {}]
  %s4 = sld [smem:[#allocation0]]
  $region45: #{tpu_custom_call.1} parent=0
    _
  %s6 = ssub.s32 1, %s4
  %s7 = scalar_select 0, %s6, %s4
  $region1: #{tpu_custom_call.1} parent=0
    #allocation2 [shape = 'u8[65536]{0}', space=vmem, size = 0x10000, scoped, tag = 'output window, operand 0']
    #allocation3 [shape = 's32[2]{0}', space=sflag, size = 0x8, scoped, tag = 'scoped memory for tpu_custom_call.1']
    %8 = vsyncpa [#allocation3], 0
    %s9 = scalar_lea.sflag [#allocation3], 1
    %10 = vsyncpa %s9, 0
    loop: start=0, step=1, limit=4
    $region2: #{tpu_custom_call.1} parent=1 // loop_pre_header
      _
    $region3: #{tpu_custom_call.1} parent=1 // loop_header
      %s12 = sphi 0, %s16
      %p13 = scmp.ge.s32.totalorder %s12, 4
      %s19 = sphi 0, %s31
      %s20 = sphi 0, %s27
      %s21 = sphi 0, %s19
      %s22 = sphi 0, %s20
      %s23 = sphi 0, %s21
      %s24 = sphi 0, %s22
      %s34 = sphi 0, %s36
      %s37 = sphi 0, %s34
      %s38 = sphi 0, %s37
      %s54 = sphi 0, %s38
      %s58 = sphi 0, %s58
      %s60 = sphi 0, %s58
      %s61 = sphi 0, %s60
      %s75 = sphi 0, %s61
      %s79 = sphi 0, %s79
      %s81 = sphi 0, %s79
      %s82 = sphi 0, %s81
      %s96 = sphi 0, %s82
      %s104 = sphi 0, %s106
      %s107 = sphi 0, %s104
      %s108 = sphi 0, %s107
      %s124 = sphi 0, %s108
    $region4: #{tpu_custom_call.1} parent=1 // loop_header_branch
      %15 = sbr.rel (%p13) target = $region8
    $region5: #{tpu_custom_call.1} parent=1 // loop_body
      %s17 = ssub.s32 %s12, 1
      %s18 = ssub.s32 %s12, 2
      %s25 = sadd.s32 1, %s20
      %p26 = scmp.ge.s32.totalorder %s25, 1
      %s27 = scalar_select %p26, 0, %s25
      %s28 = sadd.s32 1, %s19
      %s29 = scalar_select %p26, %s28, %s19
      %p30 = scmp.ge.s32.totalorder %s29, 2
      %s31 = scalar_select %p30, 0, %s29
      %s32 = ssub.s32 %s19, %s31
      %p33 = scmp.eq.s32.totalorder %s32, 0
      %s35 = sadd.s32 %s34, 1
      %s36 = scalar_select %p33, %s34, %s35
      %p39 = pneg %p33
      %p40 = scmp.eq.s32.totalorder %s12, 1
      %p41 = por %p39, %p40
      %p42 = scmp.ne.s32.totalorder %s34, %s37
      %p43 = scmp.eq.s32.totalorder %s12, 0
      %p44 = por %p42, %p43
      %p45 = scmp.ne.s32.totalorder %s34, %s37
      %p46 = scmp.eq.s32.totalorder %s17, 1
      %p47 = por %p45, %p46
      %p48 = scmp.ne.s32.totalorder %s37, %s38
      %p49 = scmp.eq.s32.totalorder %s17, 0
      %p50 = por %p48, %p49
      %p51 = scmp.ne.s32.totalorder %s37, %s38
      %p52 = scmp.eq.s32.totalorder %s18, 1
      %p53 = por %p51, %p52
      %p55 = scmp.ne.s32.totalorder %s38, %s54
      %p56 = scmp.eq.s32.totalorder %s18, 0
      %p57 = por %p55, %p56
      %s59 = sadd.s32 %s58, 1
      %p62 = scmp.eq.s32.totalorder %s12, 1
      %p63 = scmp.ne.s32.totalorder %s58, %s60
      %p64 = scmp.eq.s32.totalorder %s12, 0
      %p65 = por %p63, %p64
      %p66 = scmp.ne.s32.totalorder %s58, %s60
      %p67 = scmp.eq.s32.totalorder %s17, 1
      %p68 = por %p66, %p67
      %p69 = scmp.ne.s32.totalorder %s60, %s61
      %p70 = scmp.eq.s32.totalorder %s17, 0
      %p71 = por %p69, %p70
      %p72 = scmp.ne.s32.totalorder %s60, %s61
      %p73 = scmp.eq.s32.totalorder %s18, 1
      %p74 = por %p72, %p73
      %p76 = scmp.ne.s32.totalorder %s61, %s75
      %p77 = scmp.eq.s32.totalorder %s18, 0
      %p78 = por %p76, %p77
      %s80 = sadd.s32 %s79, 1
      %p83 = scmp.eq.s32.totalorder %s12, 1
      %p84 = scmp.ne.s32.totalorder %s79, %s81
      %p85 = scmp.eq.s32.totalorder %s12, 0
      %p86 = por %p84, %p85
      %p87 = scmp.ne.s32.totalorder %s79, %s81
      %p88 = scmp.eq.s32.totalorder %s17, 1
      %p89 = por %p87, %p88
      %p90 = scmp.ne.s32.totalorder %s81, %s82
      %p91 = scmp.eq.s32.totalorder %s17, 0
      %p92 = por %p90, %p91
      %p93 = scmp.ne.s32.totalorder %s81, %s82
      %p94 = scmp.eq.s32.totalorder %s18, 1
      %p95 = por %p93, %p94
      %p97 = scmp.ne.s32.totalorder %s82, %s96
      %p98 = scmp.eq.s32.totalorder %s18, 0
      %p99 = por %p97, %p98
      %s100 = ssub.s32 %s19, %s31
      %s101 = ssub.s32 %s20, %s27
      %s102 = sor.u32 %s100, %s101
      %p103 = scmp.eq.s32.totalorder %s102, 0
      %s105 = sadd.s32 %s104, 1
      %s106 = scalar_select %p103, %s104, %s105
      %p109 = pneg %p103
      %p110 = scmp.eq.s32.totalorder %s12, 1
      %p111 = por %p109, %p110
      %p112 = scmp.ne.s32.totalorder %s104, %s107
      %p113 = scmp.eq.s32.totalorder %s12, 0
      %p114 = por %p112, %p113
      %p115 = scmp.ne.s32.totalorder %s104, %s107
      %p116 = scmp.eq.s32.totalorder %s17, 1
      %p117 = por %p115, %p116
      %p118 = scmp.ne.s32.totalorder %s107, %s108
      %p119 = scmp.eq.s32.totalorder %s17, 0
      %p120 = por %p118, %p119
      %p121 = scmp.ne.s32.totalorder %s107, %s108
      %p122 = scmp.eq.s32.totalorder %s18, 1
      %p123 = por %p121, %p122
      %p125 = scmp.ne.s32.totalorder %s108, %s124
      %p126 = scmp.eq.s32.totalorder %s18, 0
      %p127 = por %p125, %p126
      %p128 = scmp.le.s32.totalorder 1, %s12
      %p129 = scmp.lt.s32.totalorder %s12, 3
      %p130 = pnand %p128, %p129
      %p131 = pneg %p130
      // Predicated region
      $region9: #{tpu_custom_call.1} parent=5 // pred_check
        _
      $region10: #{tpu_custom_call.1} parent=5 // pred_check_branch
        %133 = sbr.rel (%p130) target = $region12
      $region11: #{tpu_custom_call.1} parent=5 // pred_region
        %s134 = ssub.s32 %s12, 1
        // Predicated region
        $region13: #{tpu_custom_call.1} parent=11 // pred_check
          %p135 = pneg %p71
        $region14: #{tpu_custom_call.1} parent=11 // pred_check_branch
          %137 = sbr.rel (%p135) target = $region16
        $region15: #{tpu_custom_call.1} parent=11 // pred_region
          _
        $region16: #{tpu_custom_call.1} parent=11 // pred_fallthru
          _
        // Predicated region
        $region17: #{tpu_custom_call.1} parent=11 // pred_check
          %p138 = pneg %p92
        $region18: #{tpu_custom_call.1} parent=11 // pred_check_branch
          %140 = sbr.rel (%p138) target = $region20
        $region19: #{tpu_custom_call.1} parent=11 // pred_region
          _
        $region20: #{tpu_custom_call.1} parent=11 // pred_fallthru
          _
      $region12: #{tpu_custom_call.1} parent=5 // pred_fallthru
        _
      %p141 = scmp.lt.s32.totalorder %s12, 2
      // Predicated region
      $region21: #{tpu_custom_call.1} parent=5 // pred_check
        %p142 = pneg %p141
      $region22: #{tpu_custom_call.1} parent=5 // pred_check_branch
        %144 = sbr.rel (%p142) target = $region24
      $region23: #{tpu_custom_call.1} parent=5 // pred_region
        // Predicated region
        $region25: #{tpu_custom_call.1} parent=23 // pred_check
          %p145 = pneg %p44
        $region26: #{tpu_custom_call.1} parent=23 // pred_check_branch
          %147 = sbr.rel (%p145) target = $region28
        $region27: #{tpu_custom_call.1} parent=23 // pred_region
          %p148 = scmp.lt.s32.totalorder %s19, 1
          %s149 = scalar_select %p148, %s19, 1
          %s150 = smul.addr %s149, 54
          %s151 = smul.addr %s150, 8
          %s152 = scalar_lea.vmem %s0, %s151
        $region28: #{tpu_custom_call.1} parent=23 // pred_fallthru
          _
      $region24: #{tpu_custom_call.1} parent=5 // pred_fallthru
        _
      %p153 = scmp.le.s32.totalorder 1, %s12
      %p154 = scmp.lt.s32.totalorder %s12, 3
      %p155 = pnand %p153, %p154
      %p156 = pneg %p155
      // Predicated region
      $region29: #{tpu_custom_call.1} parent=5 // pred_check
        _
      $region30: #{tpu_custom_call.1} parent=5 // pred_check_branch
        %158 = sbr.rel (%p155) target = $region32
      $region31: #{tpu_custom_call.1} parent=5 // pred_region
        %s159 = ssub.s32 %s12, 1
        %p160 = scmp.lt.s32.totalorder %s21, 1
        %s161 = scalar_select %p160, %s21, 1
        %s162 = smul.addr %s161, 54
        %s163 = smul.addr %s162, 8
        %s164 = scalar_lea.vmem %s0, %s163
        %p165 = pneg %p50
        %p166 = pneg %p47
        %p167 = pneg %p71
        %p168 = pneg %p68
        %p169 = pneg %p92
        %p170 = pneg %p89
        %p171 = pneg %p120
        %p172 = pneg %p117
        %s173 = sand.u32 %s107, 1
        %s174 = scalar_lea.sflag [#allocation3], %s173
        %s175 = sand.u32 %s107, 1
        %s176 = smul.addr %s175, 64
        %s177 = scalar_lea.vmem [#allocation2], %s176
        %p178 = scmp.lt.s32.totalorder %s21, 1
        %s179 = scalar_select %p178, %s21, 1
        %s180 = smul.addr %s179, 54
        %s181 = smul.addr %s180, 8
        %s182 = scalar_lea.vmem %s0, %s181
        %v183 = vld [vmem:[%s182] sm:$0xff]
        %v184 = vld [vmem:[%s182 + $0x8] sm:$0xff]
        %v185 = vld [vmem:[%s182 + $0x18] sm:$0xff]
        %v186 = vld [vmem:[%s182 + $0x20] sm:$0xff]
        %v187 = vld [vmem:[%s182 + $0x30] sm:$0xff]
        %v188 = vld [vmem:[%s182 + $0x38] sm:$0xff]
        %v189 = vld [vmem:[%s182 + $0x48] sm:$0xff]
        %v190 = vld [vmem:[%s182 + $0x50] sm:$0xff]
        %v191 = vld [vmem:[%s182 + $0x60] sm:$0xff]
        %v192 = vld [vmem:[%s182 + $0x68] sm:$0xff]
        %v193 = vld [vmem:[%s182 + $0x78] sm:$0xff]
        %v194 = vld [vmem:[%s182 + $0x80] sm:$0xff]
        %v195 = vld [vmem:[%s182 + $0x90] sm:$0xff]
        %v196 = vld [vmem:[%s182 + $0x98] sm:$0xff]
        %v197 = vld [vmem:[%s182 + $0xa8] sm:$0xff]
        %v198 = vld [vmem:[%s182 + $0xb0] sm:$0xff]
        %v199 = vld [vmem:[%s182 + $0xc0] sm:$0xff]
        %v200 = vld [vmem:[%s182 + $0xc8] sm:$0xff]
        %v201 = vld [vmem:[%s182 + $0xd8] sm:$0xff]
        %v202 = vld [vmem:[%s182 + $0xe0] sm:$0xff]
        %v203 = vld [vmem:[%s182 + $0xf0] sm:$0xff]
        %v204 = vld [vmem:[%s182 + $0xf8] sm:$0xff]
        %v205 = vld [vmem:[%s182 + $0x108] sm:$0xff]
        %v206 = vld [vmem:[%s182 + $0x110] sm:$0xff]
        %v207 = vld [vmem:[%s182 + $0x120] sm:$0xff]
        %v208 = vld [vmem:[%s182 + $0x128] sm:$0xff]
        %v209 = vld [vmem:[%s182 + $0x138] sm:$0xff]
        %v210 = vld [vmem:[%s182 + $0x140] sm:$0xff]
        %v211 = vld [vmem:[%s182 + $0x150] sm:$0xff]
        %v212 = vld [vmem:[%s182 + $0x158] sm:$0xff]
        %v213 = vld [vmem:[%s182 + $0x168] sm:$0xff]
        %v214 = vld [vmem:[%s182 + $0x170] sm:$0xff]
        %v215 = vld [vmem:[%s182 + $0x1] sm:$0xff]
        %v216 = vld [vmem:[%s182 + $0x9] sm:$0xff]
        %v217 = vld [vmem:[%s182 + $0x19] sm:$0xff]
        %v218 = vld [vmem:[%s182 + $0x21] sm:$0xff]
        %v219 = vld [vmem:[%s182 + $0x31] sm:$0xff]
        %v220 = vld [vmem:[%s182 + $0x39] sm:$0xff]
        %v221 = vld [vmem:[%s182 + $0x49] sm:$0xff]
        %v222 = vld [vmem:[%s182 + $0x51] sm:$0xff]
        %v223 = vld [vmem:[%s182 + $0x61] sm:$0xff]
        %v224 = vld [vmem:[%s182 + $0x69] sm:$0xff]
        %v225 = vld [vmem:[%s182 + $0x79] sm:$0xff]
        %v226 = vld [vmem:[%s182 + $0x81] sm:$0xff]
        %v227 = vld [vmem:[%s182 + $0x91] sm:$0xff]
        %v228 = vld [vmem:[%s182 + $0x99] sm:$0xff]
        %v229 = vld [vmem:[%s182 + $0xa9] sm:$0xff]
        %v230 = vld [vmem:[%s182 + $0xb1] sm:$0xff]
        %v231 = vld [vmem:[%s182 + $0xc1] sm:$0xff]
        %v232 = vld [vmem:[%s182 + $0xc9] sm:$0xff]
        %v233 = vld [vmem:[%s182 + $0xd9] sm:$0xff]
        %v234 = vld [vmem:[%s182 + $0xe1] sm:$0xff]
        %v235 = vld [vmem:[%s182 + $0xf1] sm:$0xff]
        %v236 = vld [vmem:[%s182 + $0xf9] sm:$0xff]
        %v237 = vld [vmem:[%s182 + $0x109] sm:$0xff]
        %v238 = vld [vmem:[%s182 + $0x111] sm:$0xff]
        %v239 = vld [vmem:[%s182 + $0x121] sm:$0xff]
        %v240 = vld [vmem:[%s182 + $0x129] sm:$0xff]
        %v241 = vld [vmem:[%s182 + $0x139] sm:$0xff]
        %v242 = vld [vmem:[%s182 + $0x141] sm:$0xff]
        %v243 = vld [vmem:[%s182 + $0x151] sm:$0xff]
        %v244 = vld [vmem:[%s182 + $0x159] sm:$0xff]
        %v245 = vld [vmem:[%s182 + $0x169] sm:$0xff]
        %v246 = vld [vmem:[%s182 + $0x171] sm:$0xff]
        %v247 = vld [vmem:[%s182 + $0x2] sm:$0xff]
        %v248 = vld [vmem:[%s182 + $0xa] sm:$0xff]
        %v249 = vld [vmem:[%s182 + $0x1a] sm:$0xff]
        %v250 = vld [vmem:[%s182 + $0x22] sm:$0xff]
        %v251 = vld [vmem:[%s182 + $0x32] sm:$0xff]
        %v252 = vld [vmem:[%s182 + $0x3a] sm:$0xff]
        %v253 = vld [vmem:[%s182 + $0x4a] sm:$0xff]
        %v254 = vld [vmem:[%s182 + $0x52] sm:$0xff]
        %v255 = vld [vmem:[%s182 + $0x62] sm:$0xff]
        %v256 = vld [vmem:[%s182 + $0x6a] sm:$0xff]
        %v257 = vld [vmem:[%s182 + $0x7a] sm:$0xff]
        %v258 = vld [vmem:[%s182 + $0x82] sm:$0xff]
        %v259 = vld [vmem:[%s182 + $0x92] sm:$0xff]
        %v260 = vld [vmem:[%s182 + $0x9a] sm:$0xff]
        %v261 = vld [vmem:[%s182 + $0xaa] sm:$0xff]
        %v262 = vld [vmem:[%s182 + $0xb2] sm:$0xff]
        %v263 = vld [vmem:[%s182 + $0xc2] sm:$0xff]
        %v264 = vld [vmem:[%s182 + $0xca] sm:$0xff]
        %v265 = vld [vmem:[%s182 + $0xda] sm:$0xff]
        %v266 = vld [vmem:[%s182 + $0xe2] sm:$0xff]
        %v267 = vld [vmem:[%s182 + $0xf2] sm:$0xff]
        %v268 = vld [vmem:[%s182 + $0xfa] sm:$0xff]
        %v269 = vld [vmem:[%s182 + $0x10a] sm:$0xff]
        %v270 = vld [vmem:[%s182 + $0x112] sm:$0xff]
        %v271 = vld [vmem:[%s182 + $0x122] sm:$0xff]
        %v272 = vld [vmem:[%s182 + $0x12a] sm:$0xff]
        %v273 = vld [vmem:[%s182 + $0x13a] sm:$0xff]
        %v274 = vld [vmem:[%s182 + $0x142] sm:$0xff]
        %v275 = vld [vmem:[%s182 + $0x152] sm:$0xff]
        %v276 = vld [vmem:[%s182 + $0x15a] sm:$0xff]
        %v277 = vld [vmem:[%s182 + $0x16a] sm:$0xff]
        %v278 = vld [vmem:[%s182 + $0x172] sm:$0xff]
        %s279 = scalar_lea.vmem %s182, 24
        %v280 = vld [vmem:[%s279] sm:$0xff]
        %v281 = vld [vmem:[%s279 + $0x8] sm:$0xff]
        %v282 = vld [vmem:[%s279 + $0x18] sm:$0xff]
        %v283 = vld [vmem:[%s279 + $0x20] sm:$0xff]
        %v284 = vld [vmem:[%s279 + $0x30] sm:$0xff]
        %v285 = vld [vmem:[%s279 + $0x38] sm:$0xff]
        %v286 = vld [vmem:[%s279 + $0x48] sm:$0xff]
        %v287 = vld [vmem:[%s279 + $0x50] sm:$0xff]
        %v288 = vld [vmem:[%s279 + $0x60] sm:$0xff]
        %v289 = vld [vmem:[%s279 + $0x68] sm:$0xff]
        %v290 = vld [vmem:[%s279 + $0x78] sm:$0xff]
        %v291 = vld [vmem:[%s279 + $0x80] sm:$0xff]
        %v292 = vld [vmem:[%s279 + $0x90] sm:$0xff]
        %v293 = vld [vmem:[%s279 + $0x98] sm:$0xff]
        %v294 = vld [vmem:[%s279 + $0xa8] sm:$0xff]
        %v295 = vld [vmem:[%s279 + $0xb0] sm:$0xff]
        %v296 = vld [vmem:[%s279 + $0xc0] sm:$0xff]
        %v297 = vld [vmem:[%s279 + $0xc8] sm:$0xff]
        %v298 = vld [vmem:[%s279 + $0xd8] sm:$0xff]
        %v299 = vld [vmem:[%s279 + $0xe0] sm:$0xff]
        %v300 = vld [vmem:[%s279 + $0xf0] sm:$0xff]
        %v301 = vld [vmem:[%s279 + $0xf8] sm:$0xff]
        %v302 = vld [vmem:[%s279 + $0x108] sm:$0xff]
        %v303 = vld [vmem:[%s279 + $0x110] sm:$0xff]
        %v304 = vld [vmem:[%s279 + $0x120] sm:$0xff]
        %v305 = vld [vmem:[%s279 + $0x128] sm:$0xff]
        %v306 = vld [vmem:[%s279 + $0x138] sm:$0xff]
        %v307 = vld [vmem:[%s279 + $0x140] sm:$0xff]
        %v308 = vld [vmem:[%s279 + $0x150] sm:$0xff]
        %v309 = vld [vmem:[%s279 + $0x158] sm:$0xff]
        %v310 = vld [vmem:[%s279 + $0x168] sm:$0xff]
        %v311 = vld [vmem:[%s279 + $0x170] sm:$0xff]
        %v312 = vld [vmem:[%s279 + $0x1] sm:$0xff]
        %v313 = vld [vmem:[%s279 + $0x9] sm:$0xff]
        %v314 = vld [vmem:[%s279 + $0x19] sm:$0xff]
        %v315 = vld [vmem:[%s279 + $0x21] sm:$0xff]
        %v316 = vld [vmem:[%s279 + $0x31] sm:$0xff]
        %v317 = vld [vmem:[%s279 + $0x39] sm:$0xff]
        %v318 = vld [vmem:[%s279 + $0x49] sm:$0xff]
        %v319 = vld [vmem:[%s279 + $0x51] sm:$0xff]
        %v320 = vld [vmem:[%s279 + $0x61] sm:$0xff]
        %v321 = vld [vmem:[%s279 + $0x69] sm:$0xff]
        %v322 = vld [vmem:[%s279 + $0x79] sm:$0xff]
        %v323 = vld [vmem:[%s279 + $0x81] sm:$0xff]
        %v324 = vld [vmem:[%s279 + $0x91] sm:$0xff]
        %v325 = vld [vmem:[%s279 + $0x99] sm:$0xff]
        %v326 = vld [vmem:[%s279 + $0xa9] sm:$0xff]
        %v327 = vld [vmem:[%s279 + $0xb1] sm:$0xff]
        %v328 = vld [vmem:[%s279 + $0xc1] sm:$0xff]
        %v329 = vld [vmem:[%s279 + $0xc9] sm:$0xff]
        %v330 = vld [vmem:[%s279 + $0xd9] sm:$0xff]
        %v331 = vld [vmem:[%s279 + $0xe1] sm:$0xff]
        %v332 = vld [vmem:[%s279 + $0xf1] sm:$0xff]
        %v333 = vld [vmem:[%s279 + $0xf9] sm:$0xff]
        %v334 = vld [vmem:[%s279 + $0x109] sm:$0xff]
        %v335 = vld [vmem:[%s279 + $0x111] sm:$0xff]
        %v336 = vld [vmem:[%s279 + $0x121] sm:$0xff]
        %v337 = vld [vmem:[%s279 + $0x129] sm:$0xff]
        %v338 = vld [vmem:[%s279 + $0x139] sm:$0xff]
        %v339 = vld [vmem:[%s279 + $0x141] sm:$0xff]
        %v340 = vld [vmem:[%s279 + $0x151] sm:$0xff]
        %v341 = vld [vmem:[%s279 + $0x159] sm:$0xff]
        %v342 = vld [vmem:[%s279 + $0x169] sm:$0xff]
        %v343 = vld [vmem:[%s279 + $0x171] sm:$0xff]
        %v344 = vld [vmem:[%s279 + $0x2] sm:$0xff]
        %v345 = vld [vmem:[%s279 + $0xa] sm:$0xff]
        %v346 = vld [vmem:[%s279 + $0x1a] sm:$0xff]
        %v347 = vld [vmem:[%s279 + $0x22] sm:$0xff]
        %v348 = vld [vmem:[%s279 + $0x32] sm:$0xff]
        %v349 = vld [vmem:[%s279 + $0x3a] sm:$0xff]
        %v350 = vld [vmem:[%s279 + $0x4a] sm:$0xff]
        %v351 = vld [vmem:[%s279 + $0x52] sm:$0xff]
        %v352 = vld [vmem:[%s279 + $0x62] sm:$0xff]
        %v353 = vld [vmem:[%s279 + $0x6a] sm:$0xff]
        %v354 = vld [vmem:[%s279 + $0x7a] sm:$0xff]
        %v355 = vld [vmem:[%s279 + $0x82] sm:$0xff]
        %v356 = vld [vmem:[%s279 + $0x92] sm:$0xff]
        %v357 = vld [vmem:[%s279 + $0x9a] sm:$0xff]
        %v358 = vld [vmem:[%s279 + $0xaa] sm:$0xff]
        %v359 = vld [vmem:[%s279 + $0xb2] sm:$0xff]
        %v360 = vld [vmem:[%s279 + $0xc2] sm:$0xff]
        %v361 = vld [vmem:[%s279 + $0xca] sm:$0xff]
        %v362 = vld [vmem:[%s279 + $0xda] sm:$0xff]
        %v363 = vld [vmem:[%s279 + $0xe2] sm:$0xff]
        %v364 = vld [vmem:[%s279 + $0xf2] sm:$0xff]
        %v365 = vld [vmem:[%s279 + $0xfa] sm:$0xff]
        %v366 = vld [vmem:[%s279 + $0x10a] sm:$0xff]
        %v367 = vld [vmem:[%s279 + $0x112] sm:$0xff]
        %v368 = vld [vmem:[%s279 + $0x122] sm:$0xff]
        %v369 = vld [vmem:[%s279 + $0x12a] sm:$0xff]
        %v370 = vld [vmem:[%s279 + $0x13a] sm:$0xff]
        %v371 = vld [vmem:[%s279 + $0x142] sm:$0xff]
        %v372 = vld [vmem:[%s279 + $0x152] sm:$0xff]
        %v373 = vld [vmem:[%s279 + $0x15a] sm:$0xff]
        %v374 = vld [vmem:[%s279 + $0x16a] sm:$0xff]
        %v375 = vld [vmem:[%s279 + $0x172] sm:$0xff]
        %s376 = scalar_lea.vmem %s182, 48
        %v377 = vld [vmem:[%s376] sm:$0xff]
        %v378 = vld [vmem:[%s376 + $0x8] sm:$0xff]
        %v379 = vld [vmem:[%s376 + $0x18] sm:$0xff]
        %v380 = vld [vmem:[%s376 + $0x20] sm:$0xff]
        %v381 = vld [vmem:[%s376 + $0x30] sm:$0xff]
        %v382 = vld [vmem:[%s376 + $0x38] sm:$0xff]
        %v383 = vld [vmem:[%s376 + $0x48] sm:$0xff]
        %v384 = vld [vmem:[%s376 + $0x50] sm:$0xff]
        %v385 = vld [vmem:[%s376 + $0x60] sm:$0xff]
        %v386 = vld [vmem:[%s376 + $0x68] sm:$0xff]
        %v387 = vld [vmem:[%s376 + $0x78] sm:$0xff]
        %v388 = vld [vmem:[%s376 + $0x80] sm:$0xff]
        %v389 = vld [vmem:[%s376 + $0x90] sm:$0xff]
        %v390 = vld [vmem:[%s376 + $0x98] sm:$0xff]
        %v391 = vld [vmem:[%s376 + $0xa8] sm:$0xff]
        %v392 = vld [vmem:[%s376 + $0xb0] sm:$0xff]
        %v393 = vld [vmem:[%s376 + $0xc0] sm:$0xff]
        %v394 = vld [vmem:[%s376 + $0xc8] sm:$0xff]
        %v395 = vld [vmem:[%s376 + $0xd8] sm:$0xff]
        %v396 = vld [vmem:[%s376 + $0xe0] sm:$0xff]
        %v397 = vld [vmem:[%s376 + $0xf0] sm:$0xff]
        %v398 = vld [vmem:[%s376 + $0xf8] sm:$0xff]
        %v399 = vld [vmem:[%s376 + $0x108] sm:$0xff]
        %v400 = vld [vmem:[%s376 + $0x110] sm:$0xff]
        %v401 = vld [vmem:[%s376 + $0x120] sm:$0xff]
        %v402 = vld [vmem:[%s376 + $0x128] sm:$0xff]
        %v403 = vld [vmem:[%s376 + $0x138] sm:$0xff]
        %v404 = vld [vmem:[%s376 + $0x140] sm:$0xff]
        %v405 = vld [vmem:[%s376 + $0x150] sm:$0xff]
        %v406 = vld [vmem:[%s376 + $0x158] sm:$0xff]
        %v407 = vld [vmem:[%s376 + $0x168] sm:$0xff]
        %v408 = vld [vmem:[%s376 + $0x170] sm:$0xff]
        %v409 = vld [vmem:[%s376 + $0x1] sm:$0xff]
        %v410 = vld [vmem:[%s376 + $0x9] sm:$0xff]
        %v411 = vld [vmem:[%s376 + $0x19] sm:$0xff]
        %v412 = vld [vmem:[%s376 + $0x21] sm:$0xff]
        %v413 = vld [vmem:[%s376 + $0x31] sm:$0xff]
        %v414 = vld [vmem:[%s376 + $0x39] sm:$0xff]
        %v415 = vld [vmem:[%s376 + $0x49] sm:$0xff]
        %v416 = vld [vmem:[%s376 + $0x51] sm:$0xff]
        %v417 = vld [vmem:[%s376 + $0x61] sm:$0xff]
        %v418 = vld [vmem:[%s376 + $0x69] sm:$0xff]
        %v419 = vld [vmem:[%s376 + $0x79] sm:$0xff]
        %v420 = vld [vmem:[%s376 + $0x81] sm:$0xff]
        %v421 = vld [vmem:[%s376 + $0x91] sm:$0xff]
        %v422 = vld [vmem:[%s376 + $0x99] sm:$0xff]
        %v423 = vld [vmem:[%s376 + $0xa9] sm:$0xff]
        %v424 = vld [vmem:[%s376 + $0xb1] sm:$0xff]
        %v425 = vld [vmem:[%s376 + $0xc1] sm:$0xff]
        %v426 = vld [vmem:[%s376 + $0xc9] sm:$0xff]
        %v427 = vld [vmem:[%s376 + $0xd9] sm:$0xff]
        %v428 = vld [vmem:[%s376 + $0xe1] sm:$0xff]
        %v429 = vld [vmem:[%s376 + $0xf1] sm:$0xff]
        %v430 = vld [vmem:[%s376 + $0xf9] sm:$0xff]
        %v431 = vld [vmem:[%s376 + $0x109] sm:$0xff]
        %v432 = vld [vmem:[%s376 + $0x111] sm:$0xff]
        %v433 = vld [vmem:[%s376 + $0x121] sm:$0xff]
        %v434 = vld [vmem:[%s376 + $0x129] sm:$0xff]
        %v435 = vld [vmem:[%s376 + $0x139] sm:$0xff]
        %v436 = vld [vmem:[%s376 + $0x141] sm:$0xff]
        %v437 = vld [vmem:[%s376 + $0x151] sm:$0xff]
        %v438 = vld [vmem:[%s376 + $0x159] sm:$0xff]
        %v439 = vld [vmem:[%s376 + $0x169] sm:$0xff]
        %v440 = vld [vmem:[%s376 + $0x171] sm:$0xff]
        %v441 = vld [vmem:[%s376 + $0x2] sm:$0xff]
        %v442 = vld [vmem:[%s376 + $0xa] sm:$0xff]
        %v443 = vld [vmem:[%s376 + $0x1a] sm:$0xff]
        %v444 = vld [vmem:[%s376 + $0x22] sm:$0xff]
        %v445 = vld [vmem:[%s376 + $0x32] sm:$0xff]
        %v446 = vld [vmem:[%s376 + $0x3a] sm:$0xff]
        %v447 = vld [vmem:[%s376 + $0x4a] sm:$0xff]
        %v448 = vld [vmem:[%s376 + $0x52] sm:$0xff]
        %v449 = vld [vmem:[%s376 + $0x62] sm:$0xff]
        %v450 = vld [vmem:[%s376 + $0x6a] sm:$0xff]
        %v451 = vld [vmem:[%s376 + $0x7a] sm:$0xff]
        %v452 = vld [vmem:[%s376 + $0x82] sm:$0xff]
        %v453 = vld [vmem:[%s376 + $0x92] sm:$0xff]
        %v454 = vld [vmem:[%s376 + $0x9a] sm:$0xff]
        %v455 = vld [vmem:[%s376 + $0xaa] sm:$0xff]
        %v456 = vld [vmem:[%s376 + $0xb2] sm:$0xff]
        %v457 = vld [vmem:[%s376 + $0xc2] sm:$0xff]
        %v458 = vld [vmem:[%s376 + $0xca] sm:$0xff]
        %v459 = vld [vmem:[%s376 + $0xda] sm:$0xff]
        %v460 = vld [vmem:[%s376 + $0xe2] sm:$0xff]
        %v461 = vld [vmem:[%s376 + $0xf2] sm:$0xff]
        %v462 = vld [vmem:[%s376 + $0xfa] sm:$0xff]
        %v463 = vld [vmem:[%s376 + $0x10a] sm:$0xff]
        %v464 = vld [vmem:[%s376 + $0x112] sm:$0xff]
        %v465 = vld [vmem:[%s376 + $0x122] sm:$0xff]
        %v466 = vld [vmem:[%s376 + $0x12a] sm:$0xff]
        %v467 = vld [vmem:[%s376 + $0x13a] sm:$0xff]
        %v468 = vld [vmem:[%s376 + $0x142] sm:$0xff]
        %v469 = vld [vmem:[%s376 + $0x152] sm:$0xff]
        %v470 = vld [vmem:[%s376 + $0x15a] sm:$0xff]
        %v471 = vld [vmem:[%s376 + $0x16a] sm:$0xff]
        %v472 = vld [vmem:[%s376 + $0x172] sm:$0xff]
        %505 = vrot.lane.b32.xlu0 %v215, 16
        %v506 = vpop.permute.xlu0 %505
        %507 = vrot.lane.b32.xlu0 %v216, 16
        %v508 = vpop.permute.xlu0 %507
        %509 = vrot.lane.b32.xlu0 %v217, 16
        %v510 = vpop.permute.xlu0 %509
        %511 = vrot.lane.b32.xlu0 %v218, 16
        %v512 = vpop.permute.xlu0 %511
        %513 = vrot.lane.b32.xlu0 %v219, 16
        %v514 = vpop.permute.xlu0 %513
        %515 = vrot.lane.b32.xlu0 %v220, 16
        %v516 = vpop.permute.xlu0 %515
        %517 = vrot.lane.b32.xlu0 %v221, 16
        %v518 = vpop.permute.xlu0 %517
        %519 = vrot.lane.b32.xlu0 %v222, 16
        %v520 = vpop.permute.xlu0 %519
        %521 = vrot.lane.b32.xlu0 %v223, 16
        %v522 = vpop.permute.xlu0 %521
        %523 = vrot.lane.b32.xlu0 %v224, 16
        %v524 = vpop.permute.xlu0 %523
        %525 = vrot.lane.b32.xlu0 %v225, 16
        %v526 = vpop.permute.xlu0 %525
        %527 = vrot.lane.b32.xlu0 %v226, 16
        %v528 = vpop.permute.xlu0 %527
        %529 = vrot.lane.b32.xlu0 %v227, 16
        %v530 = vpop.permute.xlu0 %529
        %531 = vrot.lane.b32.xlu0 %v228, 16
        %v532 = vpop.permute.xlu0 %531
        %533 = vrot.lane.b32.xlu0 %v229, 16
        %v534 = vpop.permute.xlu0 %533
        %535 = vrot.lane.b32.xlu0 %v230, 16
        %v536 = vpop.permute.xlu0 %535
        %537 = vrot.lane.b32.xlu0 %v231, 16
        %v538 = vpop.permute.xlu0 %537
        %539 = vrot.lane.b32.xlu0 %v232, 16
        %v540 = vpop.permute.xlu0 %539
        %541 = vrot.lane.b32.xlu0 %v233, 16
        %v542 = vpop.permute.xlu0 %541
        %543 = vrot.lane.b32.xlu0 %v234, 16
        %v544 = vpop.permute.xlu0 %543
        %545 = vrot.lane.b32.xlu0 %v235, 16
        %v546 = vpop.permute.xlu0 %545
        %547 = vrot.lane.b32.xlu0 %v236, 16
        %v548 = vpop.permute.xlu0 %547
        %549 = vrot.lane.b32.xlu0 %v237, 16
        %v550 = vpop.permute.xlu0 %549
        %551 = vrot.lane.b32.xlu0 %v238, 16
        %v552 = vpop.permute.xlu0 %551
        %553 = vrot.lane.b32.xlu0 %v239, 16
        %v554 = vpop.permute.xlu0 %553
        %555 = vrot.lane.b32.xlu0 %v240, 16
        %v556 = vpop.permute.xlu0 %555
        %557 = vrot.lane.b32.xlu0 %v241, 16
        %v558 = vpop.permute.xlu0 %557
        %559 = vrot.lane.b32.xlu0 %v242, 16
        %v560 = vpop.permute.xlu0 %559
        %561 = vrot.lane.b32.xlu0 %v243, 16
        %v562 = vpop.permute.xlu0 %561
        %563 = vrot.lane.b32.xlu0 %v244, 16
        %v564 = vpop.permute.xlu0 %563
        %565 = vrot.lane.b32.xlu0 %v245, 16
        %v566 = vpop.permute.xlu0 %565
        %567 = vrot.lane.b32.xlu0 %v246, 16
        %v568 = vpop.permute.xlu0 %567
        %633 = vrot.lane.b32.xlu0 %v247, 32
        %v634 = vpop.permute.xlu0 %633
        %635 = vrot.lane.b32.xlu0 %v248, 32
        %v636 = vpop.permute.xlu0 %635
        %637 = vrot.lane.b32.xlu0 %v249, 32
        %v638 = vpop.permute.xlu0 %637
        %639 = vrot.lane.b32.xlu0 %v250, 32
        %v640 = vpop.permute.xlu0 %639
        %641 = vrot.lane.b32.xlu0 %v251, 32
        %v642 = vpop.permute.xlu0 %641
        %643 = vrot.lane.b32.xlu0 %v252, 32
        %v644 = vpop.permute.xlu0 %643
        %645 = vrot.lane.b32.xlu0 %v253, 32
        %v646 = vpop.permute.xlu0 %645
        %647 = vrot.lane.b32.xlu0 %v254, 32
        %v648 = vpop.permute.xlu0 %647
        %649 = vrot.lane.b32.xlu0 %v255, 32
        %v650 = vpop.permute.xlu0 %649
        %651 = vrot.lane.b32.xlu0 %v256, 32
        %v652 = vpop.permute.xlu0 %651
        %653 = vrot.lane.b32.xlu0 %v257, 32
        %v654 = vpop.permute.xlu0 %653
        %655 = vrot.lane.b32.xlu0 %v258, 32
        %v656 = vpop.permute.xlu0 %655
        %657 = vrot.lane.b32.xlu0 %v259, 32
        %v658 = vpop.permute.xlu0 %657
        %659 = vrot.lane.b32.xlu0 %v260, 32
        %v660 = vpop.permute.xlu0 %659
        %661 = vrot.lane.b32.xlu0 %v261, 32
        %v662 = vpop.permute.xlu0 %661
        %663 = vrot.lane.b32.xlu0 %v262, 32
        %v664 = vpop.permute.xlu0 %663
        %665 = vrot.lane.b32.xlu0 %v263, 32
        %v666 = vpop.permute.xlu0 %665
        %667 = vrot.lane.b32.xlu0 %v264, 32
        %v668 = vpop.permute.xlu0 %667
        %669 = vrot.lane.b32.xlu0 %v265, 32
        %v670 = vpop.permute.xlu0 %669
        %671 = vrot.lane.b32.xlu0 %v266, 32
        %v672 = vpop.permute.xlu0 %671
        %673 = vrot.lane.b32.xlu0 %v267, 32
        %v674 = vpop.permute.xlu0 %673
        %675 = vrot.lane.b32.xlu0 %v268, 32
        %v676 = vpop.permute.xlu0 %675
        %677 = vrot.lane.b32.xlu0 %v269, 32
        %v678 = vpop.permute.xlu0 %677
        %679 = vrot.lane.b32.xlu0 %v270, 32
        %v680 = vpop.permute.xlu0 %679
        %681 = vrot.lane.b32.xlu0 %v271, 32
        %v682 = vpop.permute.xlu0 %681
        %683 = vrot.lane.b32.xlu0 %v272, 32
        %v684 = vpop.permute.xlu0 %683
        %685 = vrot.lane.b32.xlu0 %v273, 32
        %v686 = vpop.permute.xlu0 %685
        %687 = vrot.lane.b32.xlu0 %v274, 32
        %v688 = vpop.permute.xlu0 %687
        %689 = vrot.lane.b32.xlu0 %v275, 32
        %v690 = vpop.permute.xlu0 %689
        %691 = vrot.lane.b32.xlu0 %v276, 32
        %v692 = vpop.permute.xlu0 %691
        %693 = vrot.lane.b32.xlu0 %v277, 32
        %v694 = vpop.permute.xlu0 %693
        %695 = vrot.lane.b32.xlu0 %v278, 32
        %v696 = vpop.permute.xlu0 %695
        %761 = vrot.lane.b32.xlu0 %v280, 48
        %v762 = vpop.permute.xlu0 %761
        %763 = vrot.lane.b32.xlu0 %v281, 48
        %v764 = vpop.permute.xlu0 %763
        %765 = vrot.lane.b32.xlu0 %v282, 48
        %v766 = vpop.permute.xlu0 %765
        %767 = vrot.lane.b32.xlu0 %v283, 48
        %v768 = vpop.permute.xlu0 %767
        %769 = vrot.lane.b32.xlu0 %v284, 48
        %v770 = vpop.permute.xlu0 %769
        %771 = vrot.lane.b32.xlu0 %v285, 48
        %v772 = vpop.permute.xlu0 %771
        %773 = vrot.lane.b32.xlu0 %v286, 48
        %v774 = vpop.permute.xlu0 %773
        %775 = vrot.lane.b32.xlu0 %v287, 48
        %v776 = vpop.permute.xlu0 %775
        %777 = vrot.lane.b32.xlu0 %v288, 48
        %v778 = vpop.permute.xlu0 %777
        %779 = vrot.lane.b32.xlu0 %v289, 48
        %v780 = vpop.permute.xlu0 %779
        %781 = vrot.lane.b32.xlu0 %v290, 48
        %v782 = vpop.permute.xlu0 %781
        %783 = vrot.lane.b32.xlu0 %v291, 48
        %v784 = vpop.permute.xlu0 %783
        %785 = vrot.lane.b32.xlu0 %v292, 48
        %v786 = vpop.permute.xlu0 %785
        %787 = vrot.lane.b32.xlu0 %v293, 48
        %v788 = vpop.permute.xlu0 %787
        %789 = vrot.lane.b32.xlu0 %v294, 48
        %v790 = vpop.permute.xlu0 %789
        %791 = vrot.lane.b32.xlu0 %v295, 48
        %v792 = vpop.permute.xlu0 %791
        %793 = vrot.lane.b32.xlu0 %v296, 48
        %v794 = vpop.permute.xlu0 %793
        %795 = vrot.lane.b32.xlu0 %v297, 48
        %v796 = vpop.permute.xlu0 %795
        %797 = vrot.lane.b32.xlu0 %v298, 48
        %v798 = vpop.permute.xlu0 %797
        %799 = vrot.lane.b32.xlu0 %v299, 48
        %v800 = vpop.permute.xlu0 %799
        %801 = vrot.lane.b32.xlu0 %v300, 48
        %v802 = vpop.permute.xlu0 %801
        %803 = vrot.lane.b32.xlu0 %v301, 48
        %v804 = vpop.permute.xlu0 %803
        %805 = vrot.lane.b32.xlu0 %v302, 48
        %v806 = vpop.permute.xlu0 %805
        %807 = vrot.lane.b32.xlu0 %v303, 48
        %v808 = vpop.permute.xlu0 %807
        %809 = vrot.lane.b32.xlu0 %v304, 48
        %v810 = vpop.permute.xlu0 %809
        %811 = vrot.lane.b32.xlu0 %v305, 48
        %v812 = vpop.permute.xlu0 %811
        %813 = vrot.lane.b32.xlu0 %v306, 48
        %v814 = vpop.permute.xlu0 %813
        %815 = vrot.lane.b32.xlu0 %v307, 48
        %v816 = vpop.permute.xlu0 %815
        %817 = vrot.lane.b32.xlu0 %v308, 48
        %v818 = vpop.permute.xlu0 %817
        %819 = vrot.lane.b32.xlu0 %v309, 48
        %v820 = vpop.permute.xlu0 %819
        %821 = vrot.lane.b32.xlu0 %v310, 48
        %v822 = vpop.permute.xlu0 %821
        %823 = vrot.lane.b32.xlu0 %v311, 48
        %v824 = vpop.permute.xlu0 %823
        %889 = vrot.lane.b32.xlu0 %v312, 64
        %v890 = vpop.permute.xlu0 %889
        %891 = vrot.lane.b32.xlu0 %v313, 64
        %v892 = vpop.permute.xlu0 %891
        %893 = vrot.lane.b32.xlu0 %v314, 64
        %v894 = vpop.permute.xlu0 %893
        %895 = vrot.lane.b32.xlu0 %v315, 64
        %v896 = vpop.permute.xlu0 %895
        %897 = vrot.lane.b32.xlu0 %v316, 64
        %v898 = vpop.permute.xlu0 %897
        %899 = vrot.lane.b32.xlu0 %v317, 64
        %v900 = vpop.permute.xlu0 %899
        %901 = vrot.lane.b32.xlu0 %v318, 64
        %v902 = vpop.permute.xlu0 %901
        %903 = vrot.lane.b32.xlu0 %v319, 64
        %v904 = vpop.permute.xlu0 %903
        %905 = vrot.lane.b32.xlu0 %v320, 64
        %v906 = vpop.permute.xlu0 %905
        %907 = vrot.lane.b32.xlu0 %v321, 64
        %v908 = vpop.permute.xlu0 %907
        %909 = vrot.lane.b32.xlu0 %v322, 64
        %v910 = vpop.permute.xlu0 %909
        %911 = vrot.lane.b32.xlu0 %v323, 64
        %v912 = vpop.permute.xlu0 %911
        %913 = vrot.lane.b32.xlu0 %v324, 64
        %v914 = vpop.permute.xlu0 %913
        %915 = vrot.lane.b32.xlu0 %v325, 64
        %v916 = vpop.permute.xlu0 %915
        %917 = vrot.lane.b32.xlu0 %v326, 64
        %v918 = vpop.permute.xlu0 %917
        %919 = vrot.lane.b32.xlu0 %v327, 64
        %v920 = vpop.permute.xlu0 %919
        %921 = vrot.lane.b32.xlu0 %v328, 64
        %v922 = vpop.permute.xlu0 %921
        %923 = vrot.lane.b32.xlu0 %v329, 64
        %v924 = vpop.permute.xlu0 %923
        %925 = vrot.lane.b32.xlu0 %v330, 64
        %v926 = vpop.permute.xlu0 %925
        %927 = vrot.lane.b32.xlu0 %v331, 64
        %v928 = vpop.permute.xlu0 %927
        %929 = vrot.lane.b32.xlu0 %v332, 64
        %v930 = vpop.permute.xlu0 %929
        %931 = vrot.lane.b32.xlu0 %v333, 64
        %v932 = vpop.permute.xlu0 %931
        %933 = vrot.lane.b32.xlu0 %v334, 64
        %v934 = vpop.permute.xlu0 %933
        %935 = vrot.lane.b32.xlu0 %v335, 64
        %v936 = vpop.permute.xlu0 %935
        %937 = vrot.lane.b32.xlu0 %v336, 64
        %v938 = vpop.permute.xlu0 %937
        %939 = vrot.lane.b32.xlu0 %v337, 64
        %v940 = vpop.permute.xlu0 %939
        %941 = vrot.lane.b32.xlu0 %v338, 64
        %v942 = vpop.permute.xlu0 %941
        %943 = vrot.lane.b32.xlu0 %v339, 64
        %v944 = vpop.permute.xlu0 %943
        %945 = vrot.lane.b32.xlu0 %v340, 64
        %v946 = vpop.permute.xlu0 %945
        %947 = vrot.lane.b32.xlu0 %v341, 64
        %v948 = vpop.permute.xlu0 %947
        %949 = vrot.lane.b32.xlu0 %v342, 64
        %v950 = vpop.permute.xlu0 %949
        %951 = vrot.lane.b32.xlu0 %v343, 64
        %v952 = vpop.permute.xlu0 %951
        %1017 = vrot.lane.b32.xlu0 %v344, 80
        %v1018 = vpop.permute.xlu0 %1017
        %1019 = vrot.lane.b32.xlu0 %v345, 80
        %v1020 = vpop.permute.xlu0 %1019
        %1021 = vrot.lane.b32.xlu0 %v346, 80
        %v1022 = vpop.permute.xlu0 %1021
        %1023 = vrot.lane.b32.xlu0 %v347, 80
        %v1024 = vpop.permute.xlu0 %1023
        %1025 = vrot.lane.b32.xlu0 %v348, 80
        %v1026 = vpop.permute.xlu0 %1025
        %1027 = vrot.lane.b32.xlu0 %v349, 80
        %v1028 = vpop.permute.xlu0 %1027
        %1029 = vrot.lane.b32.xlu0 %v350, 80
        %v1030 = vpop.permute.xlu0 %1029
        %1031 = vrot.lane.b32.xlu0 %v351, 80
        %v1032 = vpop.permute.xlu0 %1031
        %1033 = vrot.lane.b32.xlu0 %v352, 80
        %v1034 = vpop.permute.xlu0 %1033
        %1035 = vrot.lane.b32.xlu0 %v353, 80
        %v1036 = vpop.permute.xlu0 %1035
        %1037 = vrot.lane.b32.xlu0 %v354, 80
        %v1038 = vpop.permute.xlu0 %1037
        %1039 = vrot.lane.b32.xlu0 %v355, 80
        %v1040 = vpop.permute.xlu0 %1039
        %1041 = vrot.lane.b32.xlu0 %v356, 80
        %v1042 = vpop.permute.xlu0 %1041
        %1043 = vrot.lane.b32.xlu0 %v357, 80
        %v1044 = vpop.permute.xlu0 %1043
        %1045 = vrot.lane.b32.xlu0 %v358, 80
        %v1046 = vpop.permute.xlu0 %1045
        %1047 = vrot.lane.b32.xlu0 %v359, 80
        %v1048 = vpop.permute.xlu0 %1047
        %1049 = vrot.lane.b32.xlu0 %v360, 80
        %v1050 = vpop.permute.xlu0 %1049
        %1051 = vrot.lane.b32.xlu0 %v361, 80
        %v1052 = vpop.permute.xlu0 %1051
        %1053 = vrot.lane.b32.xlu0 %v362, 80
        %v1054 = vpop.permute.xlu0 %1053
        %1055 = vrot.lane.b32.xlu0 %v363, 80
        %v1056 = vpop.permute.xlu0 %1055
        %1057 = vrot.lane.b32.xlu0 %v364, 80
        %v1058 = vpop.permute.xlu0 %1057
        %1059 = vrot.lane.b32.xlu0 %v365, 80
        %v1060 = vpop.permute.xlu0 %1059
        %1061 = vrot.lane.b32.xlu0 %v366, 80
        %v1062 = vpop.permute.xlu0 %1061
        %1063 = vrot.lane.b32.xlu0 %v367, 80
        %v1064 = vpop.permute.xlu0 %1063
        %1065 = vrot.lane.b32.xlu0 %v368, 80
        %v1066 = vpop.permute.xlu0 %1065
        %1067 = vrot.lane.b32.xlu0 %v369, 80
        %v1068 = vpop.permute.xlu0 %1067
        %1069 = vrot.lane.b32.xlu0 %v370, 80
        %v1070 = vpop.permute.xlu0 %1069
        %1071 = vrot.lane.b32.xlu0 %v371, 80
        %v1072 = vpop.permute.xlu0 %1071
        %1073 = vrot.lane.b32.xlu0 %v372, 80
        %v1074 = vpop.permute.xlu0 %1073
        %1075 = vrot.lane.b32.xlu0 %v373, 80
        %v1076 = vpop.permute.xlu0 %1075
        %1077 = vrot.lane.b32.xlu0 %v374, 80
        %v1078 = vpop.permute.xlu0 %1077
        %1079 = vrot.lane.b32.xlu0 %v375, 80
        %v1080 = vpop.permute.xlu0 %1079
        %1145 = vrot.lane.b32.xlu0 %v377, 96
        %v1146 = vpop.permute.xlu0 %1145
        %1147 = vrot.lane.b32.xlu0 %v378, 96
        %v1148 = vpop.permute.xlu0 %1147
        %1149 = vrot.lane.b32.xlu0 %v379, 96
        %v1150 = vpop.permute.xlu0 %1149
        %1151 = vrot.lane.b32.xlu0 %v380, 96
        %v1152 = vpop.permute.xlu0 %1151
        %1153 = vrot.lane.b32.xlu0 %v381, 96
        %v1154 = vpop.permute.xlu0 %1153
        %1155 = vrot.lane.b32.xlu0 %v382, 96
        %v1156 = vpop.permute.xlu0 %1155
        %1157 = vrot.lane.b32.xlu0 %v383, 96
        %v1158 = vpop.permute.xlu0 %1157
        %1159 = vrot.lane.b32.xlu0 %v384, 96
        %v1160 = vpop.permute.xlu0 %1159
        %1161 = vrot.lane.b32.xlu0 %v385, 96
        %v1162 = vpop.permute.xlu0 %1161
        %1163 = vrot.lane.b32.xlu0 %v386, 96
        %v1164 = vpop.permute.xlu0 %1163
        %1165 = vrot.lane.b32.xlu0 %v387, 96
        %v1166 = vpop.permute.xlu0 %1165
        %1167 = vrot.lane.b32.xlu0 %v388, 96
        %v1168 = vpop.permute.xlu0 %1167
        %1169 = vrot.lane.b32.xlu0 %v389, 96
        %v1170 = vpop.permute.xlu0 %1169
        %1171 = vrot.lane.b32.xlu0 %v390, 96
        %v1172 = vpop.permute.xlu0 %1171
        %1173 = vrot.lane.b32.xlu0 %v391, 96
        %v1174 = vpop.permute.xlu0 %1173
        %1175 = vrot.lane.b32.xlu0 %v392, 96
        %v1176 = vpop.permute.xlu0 %1175
        %1177 = vrot.lane.b32.xlu0 %v393, 96
        %v1178 = vpop.permute.xlu0 %1177
        %1179 = vrot.lane.b32.xlu0 %v394, 96
        %v1180 = vpop.permute.xlu0 %1179
        %1181 = vrot.lane.b32.xlu0 %v395, 96
        %v1182 = vpop.permute.xlu0 %1181
        %1183 = vrot.lane.b32.xlu0 %v396, 96
        %v1184 = vpop.permute.xlu0 %1183
        %1185 = vrot.lane.b32.xlu0 %v397, 96
        %v1186 = vpop.permute.xlu0 %1185
        %1187 = vrot.lane.b32.xlu0 %v398, 96
        %v1188 = vpop.permute.xlu0 %1187
        %1189 = vrot.lane.b32.xlu0 %v399, 96
        %v1190 = vpop.permute.xlu0 %1189
        %1191 = vrot.lane.b32.xlu0 %v400, 96
        %v1192 = vpop.permute.xlu0 %1191
        %1193 = vrot.lane.b32.xlu0 %v401, 96
        %v1194 = vpop.permute.xlu0 %1193
        %1195 = vrot.lane.b32.xlu0 %v402, 96
        %v1196 = vpop.permute.xlu0 %1195
        %1197 = vrot.lane.b32.xlu0 %v403, 96
        %v1198 = vpop.permute.xlu0 %1197
        %1199 = vrot.lane.b32.xlu0 %v404, 96
        %v1200 = vpop.permute.xlu0 %1199
        %1201 = vrot.lane.b32.xlu0 %v405, 96
        %v1202 = vpop.permute.xlu0 %1201
        %1203 = vrot.lane.b32.xlu0 %v406, 96
        %v1204 = vpop.permute.xlu0 %1203
        %1205 = vrot.lane.b32.xlu0 %v407, 96
        %v1206 = vpop.permute.xlu0 %1205
        %1207 = vrot.lane.b32.xlu0 %v408, 96
        %v1208 = vpop.permute.xlu0 %1207
        %1273 = vrot.lane.b32.xlu0 %v409, 112
        %v1274 = vpop.permute.xlu0 %1273
        %1275 = vrot.lane.b32.xlu0 %v410, 112
        %v1276 = vpop.permute.xlu0 %1275
        %1277 = vrot.lane.b32.xlu0 %v411, 112
        %v1278 = vpop.permute.xlu0 %1277
        %1279 = vrot.lane.b32.xlu0 %v412, 112
        %v1280 = vpop.permute.xlu0 %1279
        %1281 = vrot.lane.b32.xlu0 %v413, 112
        %v1282 = vpop.permute.xlu0 %1281
        %1283 = vrot.lane.b32.xlu0 %v414, 112
        %v1284 = vpop.permute.xlu0 %1283
        %1285 = vrot.lane.b32.xlu0 %v415, 112
        %v1286 = vpop.permute.xlu0 %1285
        %1287 = vrot.lane.b32.xlu0 %v416, 112
        %v1288 = vpop.permute.xlu0 %1287
        %1289 = vrot.lane.b32.xlu0 %v417, 112
        %v1290 = vpop.permute.xlu0 %1289
        %1291 = vrot.lane.b32.xlu0 %v418, 112
        %v1292 = vpop.permute.xlu0 %1291
        %1293 = vrot.lane.b32.xlu0 %v419, 112
        %v1294 = vpop.permute.xlu0 %1293
        %1295 = vrot.lane.b32.xlu0 %v420, 112
        %v1296 = vpop.permute.xlu0 %1295
        %1297 = vrot.lane.b32.xlu0 %v421, 112
        %v1298 = vpop.permute.xlu0 %1297
        %1299 = vrot.lane.b32.xlu0 %v422, 112
        %v1300 = vpop.permute.xlu0 %1299
        %1301 = vrot.lane.b32.xlu0 %v423, 112
        %v1302 = vpop.permute.xlu0 %1301
        %1303 = vrot.lane.b32.xlu0 %v424, 112
        %v1304 = vpop.permute.xlu0 %1303
        %1305 = vrot.lane.b32.xlu0 %v425, 112
        %v1306 = vpop.permute.xlu0 %1305
        %1307 = vrot.lane.b32.xlu0 %v426, 112
        %v1308 = vpop.permute.xlu0 %1307
        %1309 = vrot.lane.b32.xlu0 %v427, 112
        %v1310 = vpop.permute.xlu0 %1309
        %1311 = vrot.lane.b32.xlu0 %v428, 112
        %v1312 = vpop.permute.xlu0 %1311
        %1313 = vrot.lane.b32.xlu0 %v429, 112
        %v1314 = vpop.permute.xlu0 %1313
        %1315 = vrot.lane.b32.xlu0 %v430, 112
        %v1316 = vpop.permute.xlu0 %1315
        %1317 = vrot.lane.b32.xlu0 %v431, 112
        %v1318 = vpop.permute.xlu0 %1317
        %1319 = vrot.lane.b32.xlu0 %v432, 112
        %v1320 = vpop.permute.xlu0 %1319
        %1321 = vrot.lane.b32.xlu0 %v433, 112
        %v1322 = vpop.permute.xlu0 %1321
        %1323 = vrot.lane.b32.xlu0 %v434, 112
        %v1324 = vpop.permute.xlu0 %1323
        %1325 = vrot.lane.b32.xlu0 %v435, 112
        %v1326 = vpop.permute.xlu0 %1325
        %1327 = vrot.lane.b32.xlu0 %v436, 112
        %v1328 = vpop.permute.xlu0 %1327
        %1329 = vrot.lane.b32.xlu0 %v437, 112
        %v1330 = vpop.permute.xlu0 %1329
        %1331 = vrot.lane.b32.xlu0 %v438, 112
        %v1332 = vpop.permute.xlu0 %1331
        %1333 = vrot.lane.b32.xlu0 %v439, 112
        %v1334 = vpop.permute.xlu0 %1333
        %1335 = vrot.lane.b32.xlu0 %v440, 112
        %v1336 = vpop.permute.xlu0 %1335
        %vm1369 = vcmask 130048
        %v1370 = vsel %vm1369, %v183, %v506
        %v1371 = vsel %vm1369, %v184, %v508
        %v1372 = vsel %vm1369, %v185, %v510
        %v1373 = vsel %vm1369, %v186, %v512
        %v1374 = vsel %vm1369, %v187, %v514
        %v1375 = vsel %vm1369, %v188, %v516
        %v1376 = vsel %vm1369, %v189, %v518
        %v1377 = vsel %vm1369, %v190, %v520
        %v1378 = vsel %vm1369, %v191, %v522
        %v1379 = vsel %vm1369, %v192, %v524
        %v1380 = vsel %vm1369, %v193, %v526
        %v1381 = vsel %vm1369, %v194, %v528
        %v1382 = vsel %vm1369, %v195, %v530
        %v1383 = vsel %vm1369, %v196, %v532
        %v1384 = vsel %vm1369, %v197, %v534
        %v1385 = vsel %vm1369, %v198, %v536
        %v1386 = vsel %vm1369, %v199, %v538
        %v1387 = vsel %vm1369, %v200, %v540
        %v1388 = vsel %vm1369, %v201, %v542
        %v1389 = vsel %vm1369, %v202, %v544
        %v1390 = vsel %vm1369, %v203, %v546
        %v1391 = vsel %vm1369, %v204, %v548
        %v1392 = vsel %vm1369, %v205, %v550
        %v1393 = vsel %vm1369, %v206, %v552
        %v1394 = vsel %vm1369, %v207, %v554
        %v1395 = vsel %vm1369, %v208, %v556
        %v1396 = vsel %vm1369, %v209, %v558
        %v1397 = vsel %vm1369, %v210, %v560
        %v1398 = vsel %vm1369, %v211, %v562
        %v1399 = vsel %vm1369, %v212, %v564
        %v1400 = vsel %vm1369, %v213, %v566
        %v1401 = vsel %vm1369, %v214, %v568
        %vm1402 = vcmask 261120
        %v1403 = vsel %vm1402, %v1370, %v634
        %v1404 = vsel %vm1402, %v1371, %v636
        %v1405 = vsel %vm1402, %v1372, %v638
        %v1406 = vsel %vm1402, %v1373, %v640
        %v1407 = vsel %vm1402, %v1374, %v642
        %v1408 = vsel %vm1402, %v1375, %v644
        %v1409 = vsel %vm1402, %v1376, %v646
        %v1410 = vsel %vm1402, %v1377, %v648
        %v1411 = vsel %vm1402, %v1378, %v650
        %v1412 = vsel %vm1402, %v1379, %v652
        %v1413 = vsel %vm1402, %v1380, %v654
        %v1414 = vsel %vm1402, %v1381, %v656
        %v1415 = vsel %vm1402, %v1382, %v658
        %v1416 = vsel %vm1402, %v1383, %v660
        %v1417 = vsel %vm1402, %v1384, %v662
        %v1418 = vsel %vm1402, %v1385, %v664
        %v1419 = vsel %vm1402, %v1386, %v666
        %v1420 = vsel %vm1402, %v1387, %v668
        %v1421 = vsel %vm1402, %v1388, %v670
        %v1422 = vsel %vm1402, %v1389, %v672
        %v1423 = vsel %vm1402, %v1390, %v674
        %v1424 = vsel %vm1402, %v1391, %v676
        %v1425 = vsel %vm1402, %v1392, %v678
        %v1426 = vsel %vm1402, %v1393, %v680
        %v1427 = vsel %vm1402, %v1394, %v682
        %v1428 = vsel %vm1402, %v1395, %v684
        %v1429 = vsel %vm1402, %v1396, %v686
        %v1430 = vsel %vm1402, %v1397, %v688
        %v1431 = vsel %vm1402, %v1398, %v690
        %v1432 = vsel %vm1402, %v1399, %v692
        %v1433 = vsel %vm1402, %v1400, %v694
        %v1434 = vsel %vm1402, %v1401, %v696
        %vm1435 = vcmask 392192
        %v1436 = vsel %vm1435, %v1403, %v762
        %v1437 = vsel %vm1435, %v1404, %v764
        %v1438 = vsel %vm1435, %v1405, %v766
        %v1439 = vsel %vm1435, %v1406, %v768
        %v1440 = vsel %vm1435, %v1407, %v770
        %v1441 = vsel %vm1435, %v1408, %v772
        %v1442 = vsel %vm1435, %v1409, %v774
        %v1443 = vsel %vm1435, %v1410, %v776
        %v1444 = vsel %vm1435, %v1411, %v778
        %v1445 = vsel %vm1435, %v1412, %v780
        %v1446 = vsel %vm1435, %v1413, %v782
        %v1447 = vsel %vm1435, %v1414, %v784
        %v1448 = vsel %vm1435, %v1415, %v786
        %v1449 = vsel %vm1435, %v1416, %v788
        %v1450 = vsel %vm1435, %v1417, %v790
        %v1451 = vsel %vm1435, %v1418, %v792
        %v1452 = vsel %vm1435, %v1419, %v794
        %v1453 = vsel %vm1435, %v1420, %v796
        %v1454 = vsel %vm1435, %v1421, %v798
        %v1455 = vsel %vm1435, %v1422, %v800
        %v1456 = vsel %vm1435, %v1423, %v802
        %v1457 = vsel %vm1435, %v1424, %v804
        %v1458 = vsel %vm1435, %v1425, %v806
        %v1459 = vsel %vm1435, %v1426, %v808
        %v1460 = vsel %vm1435, %v1427, %v810
        %v1461 = vsel %vm1435, %v1428, %v812
        %v1462 = vsel %vm1435, %v1429, %v814
        %v1463 = vsel %vm1435, %v1430, %v816
        %v1464 = vsel %vm1435, %v1431, %v818
        %v1465 = vsel %vm1435, %v1432, %v820
        %v1466 = vsel %vm1435, %v1433, %v822
        %v1467 = vsel %vm1435, %v1434, %v824
        %vm1468 = vcmask 523264
        %v1469 = vsel %vm1468, %v1436, %v890
        %v1470 = vsel %vm1468, %v1437, %v892
        %v1471 = vsel %vm1468, %v1438, %v894
        %v1472 = vsel %vm1468, %v1439, %v896
        %v1473 = vsel %vm1468, %v1440, %v898
        %v1474 = vsel %vm1468, %v1441, %v900
        %v1475 = vsel %vm1468, %v1442, %v902
        %v1476 = vsel %vm1468, %v1443, %v904
        %v1477 = vsel %vm1468, %v1444, %v906
        %v1478 = vsel %vm1468, %v1445, %v908
        %v1479 = vsel %vm1468, %v1446, %v910
        %v1480 = vsel %vm1468, %v1447, %v912
        %v1481 = vsel %vm1468, %v1448, %v914
        %v1482 = vsel %vm1468, %v1449, %v916
        %v1483 = vsel %vm1468, %v1450, %v918
        %v1484 = vsel %vm1468, %v1451, %v920
        %v1485 = vsel %vm1468, %v1452, %v922
        %v1486 = vsel %vm1468, %v1453, %v924
        %v1487 = vsel %vm1468, %v1454, %v926
        %v1488 = vsel %vm1468, %v1455, %v928
        %v1489 = vsel %vm1468, %v1456, %v930
        %v1490 = vsel %vm1468, %v1457, %v932
        %v1491 = vsel %vm1468, %v1458, %v934
        %v1492 = vsel %vm1468, %v1459, %v936
        %v1493 = vsel %vm1468, %v1460, %v938
        %v1494 = vsel %vm1468, %v1461, %v940
        %v1495 = vsel %vm1468, %v1462, %v942
        %v1496 = vsel %vm1468, %v1463, %v944
        %v1497 = vsel %vm1468, %v1464, %v946
        %v1498 = vsel %vm1468, %v1465, %v948
        %v1499 = vsel %vm1468, %v1466, %v950
        %v1500 = vsel %vm1468, %v1467, %v952
        %vm1501 = vcmask 654336
        %v1502 = vsel %vm1501, %v1469, %v1018
        %v1503 = vsel %vm1501, %v1470, %v1020
        %v1504 = vsel %vm1501, %v1471, %v1022
        %v1505 = vsel %vm1501, %v1472, %v1024
        %v1506 = vsel %vm1501, %v1473, %v1026
        %v1507 = vsel %vm1501, %v1474, %v1028
        %v1508 = vsel %vm1501, %v1475, %v1030
        %v1509 = vsel %vm1501, %v1476, %v1032
        %v1510 = vsel %vm1501, %v1477, %v1034
        %v1511 = vsel %vm1501, %v1478, %v1036
        %v1512 = vsel %vm1501, %v1479, %v1038
        %v1513 = vsel %vm1501, %v1480, %v1040
        %v1514 = vsel %vm1501, %v1481, %v1042
        %v1515 = vsel %vm1501, %v1482, %v1044
        %v1516 = vsel %vm1501, %v1483, %v1046
        %v1517 = vsel %vm1501, %v1484, %v1048
        %v1518 = vsel %vm1501, %v1485, %v1050
        %v1519 = vsel %vm1501, %v1486, %v1052
        %v1520 = vsel %vm1501, %v1487, %v1054
        %v1521 = vsel %vm1501, %v1488, %v1056
        %v1522 = vsel %vm1501, %v1489, %v1058
        %v1523 = vsel %vm1501, %v1490, %v1060
        %v1524 = vsel %vm1501, %v1491, %v1062
        %v1525 = vsel %vm1501, %v1492, %v1064
        %v1526 = vsel %vm1501, %v1493, %v1066
        %v1527 = vsel %vm1501, %v1494, %v1068
        %v1528 = vsel %vm1501, %v1495, %v1070
        %v1529 = vsel %vm1501, %v1496, %v1072
        %v1530 = vsel %vm1501, %v1497, %v1074
        %v1531 = vsel %vm1501, %v1498, %v1076
        %v1532 = vsel %vm1501, %v1499, %v1078
        %v1533 = vsel %vm1501, %v1500, %v1080
        %vm1534 = vcmask 785408
        %v1535 = vsel %vm1534, %v1502, %v1146
        %v1536 = vsel %vm1534, %v1503, %v1148
        %v1537 = vsel %vm1534, %v1504, %v1150
        %v1538 = vsel %vm1534, %v1505, %v1152
        %v1539 = vsel %vm1534, %v1506, %v1154
        %v1540 = vsel %vm1534, %v1507, %v1156
        %v1541 = vsel %vm1534, %v1508, %v1158
        %v1542 = vsel %vm1534, %v1509, %v1160
        %v1543 = vsel %vm1534, %v1510, %v1162
        %v1544 = vsel %vm1534, %v1511, %v1164
        %v1545 = vsel %vm1534, %v1512, %v1166
        %v1546 = vsel %vm1534, %v1513, %v1168
        %v1547 = vsel %vm1534, %v1514, %v1170
        %v1548 = vsel %vm1534, %v1515, %v1172
        %v1549 = vsel %vm1534, %v1516, %v1174
        %v1550 = vsel %vm1534, %v1517, %v1176
        %v1551 = vsel %vm1534, %v1518, %v1178
        %v1552 = vsel %vm1534, %v1519, %v1180
        %v1553 = vsel %vm1534, %v1520, %v1182
        %v1554 = vsel %vm1534, %v1521, %v1184
        %v1555 = vsel %vm1534, %v1522, %v1186
        %v1556 = vsel %vm1534, %v1523, %v1188
        %v1557 = vsel %vm1534, %v1524, %v1190
        %v1558 = vsel %vm1534, %v1525, %v1192
        %v1559 = vsel %vm1534, %v1526, %v1194
        %v1560 = vsel %vm1534, %v1527, %v1196
        %v1561 = vsel %vm1534, %v1528, %v1198
        %v1562 = vsel %vm1534, %v1529, %v1200
        %v1563 = vsel %vm1534, %v1530, %v1202
        %v1564 = vsel %vm1534, %v1531, %v1204
        %v1565 = vsel %vm1534, %v1532, %v1206
        %v1566 = vsel %vm1534, %v1533, %v1208
        %vm1567 = vcmask 916480
        %v1568 = vsel %vm1567, %v1535, %v1274
        %v1569 = vsel %vm1567, %v1536, %v1276
        %v1570 = vsel %vm1567, %v1537, %v1278
        %v1571 = vsel %vm1567, %v1538, %v1280
        %v1572 = vsel %vm1567, %v1539, %v1282
        %v1573 = vsel %vm1567, %v1540, %v1284
        %v1574 = vsel %vm1567, %v1541, %v1286
        %v1575 = vsel %vm1567, %v1542, %v1288
        %v1576 = vsel %vm1567, %v1543, %v1290
        %v1577 = vsel %vm1567, %v1544, %v1292
        %v1578 = vsel %vm1567, %v1545, %v1294
        %v1579 = vsel %vm1567, %v1546, %v1296
        %v1580 = vsel %vm1567, %v1547, %v1298
        %v1581 = vsel %vm1567, %v1548, %v1300
        %v1582 = vsel %vm1567, %v1549, %v1302
        %v1583 = vsel %vm1567, %v1550, %v1304
        %v1584 = vsel %vm1567, %v1551, %v1306
        %v1585 = vsel %vm1567, %v1552, %v1308
        %v1586 = vsel %vm1567, %v1553, %v1310
        %v1587 = vsel %vm1567, %v1554, %v1312
        %v1588 = vsel %vm1567, %v1555, %v1314
        %v1589 = vsel %vm1567, %v1556, %v1316
        %v1590 = vsel %vm1567, %v1557, %v1318
        %v1591 = vsel %vm1567, %v1558, %v1320
        %v1592 = vsel %vm1567, %v1559, %v1322
        %v1593 = vsel %vm1567, %v1560, %v1324
        %v1594 = vsel %vm1567, %v1561, %v1326
        %v1595 = vsel %vm1567, %v1562, %v1328
        %v1596 = vsel %vm1567, %v1563, %v1330
        %v1597 = vsel %vm1567, %v1564, %v1332
        %v1598 = vsel %vm1567, %v1565, %v1334
        %v1599 = vsel %vm1567, %v1566, %v1336
        %v1600 = vld [vmem:[%s1] sm:$0xff]
        %v1601 = vld [vmem:[%s1 + $0x8] sm:$0xff]
        %v1602 = vld [vmem:[%s1 + $0x10] sm:$0xff]
        %v1603 = vld [vmem:[%s1 + $0x18] sm:$0xff]
        %v1604 = vld [vmem:[%s1 + $0x20] sm:$0xff]
        %v1605 = vld [vmem:[%s1 + $0x28] sm:$0xff]
        %v1606 = vld [vmem:[%s1 + $0x30] sm:$0xff]
        %v1607 = vld [vmem:[%s1 + $0x38] sm:$0xff]
        %v1608 = vld [vmem:[%s1 + $0x40] sm:$0xff]
        %v1609 = vld [vmem:[%s1 + $0x48] sm:$0xff]
        %v1610 = vld [vmem:[%s1 + $0x50] sm:$0xff]
        %v1611 = vld [vmem:[%s1 + $0x58] sm:$0xff]
        %v1612 = vld [vmem:[%s1 + $0x60] sm:$0xff]
        %v1613 = vld [vmem:[%s1 + $0x68] sm:$0xff]
        %v1614 = vld [vmem:[%s1 + $0x70] sm:$0xff]
        %v1615 = vld [vmem:[%s1 + $0x78] sm:$0xff]
        %v1616 = vld [vmem:[%s1 + $0x80] sm:$0xff]
        %v1617 = vld [vmem:[%s1 + $0x88] sm:$0xff]
        %v1618 = vld [vmem:[%s2] sm:$0x1]
        %v1620 = vlaneseq
        %v1621 = vshrl.u32 %v1620, 7
        %v1622 = vsub.s32 0, %v1621
        %v1623 = vrot.slane %v1618, %v1622
        %v1626 = vsel %vm1369, %v441, 0
        %v1629 = vsel %vm1369, %v442, 0
        %v1632 = vsel %vm1369, %v443, 0
        %v1635 = vsel %vm1369, %v444, 0
        %v1638 = vsel %vm1369, %v445, 0
        %v1641 = vsel %vm1369, %v446, 0
        %v1644 = vsel %vm1369, %v447, 0
        %v1647 = vsel %vm1369, %v448, 0
        %v1650 = vsel %vm1369, %v449, 0
        %v1653 = vsel %vm1369, %v450, 0
        %v1656 = vsel %vm1369, %v451, 0
        %v1659 = vsel %vm1369, %v452, 0
        %v1662 = vsel %vm1369, %v453, 0
        %v1665 = vsel %vm1369, %v454, 0
        %v1668 = vsel %vm1369, %v455, 0
        %v1671 = vsel %vm1369, %v456, 0
        %v1674 = vsel %vm1369, %v457, 0
        %v1677 = vsel %vm1369, %v458, 0
        %v1680 = vsel %vm1369, %v459, 0
        %v1683 = vsel %vm1369, %v460, 0
        %v1686 = vsel %vm1369, %v461, 0
        %v1689 = vsel %vm1369, %v462, 0
        %v1692 = vsel %vm1369, %v463, 0
        %v1695 = vsel %vm1369, %v464, 0
        %v1698 = vsel %vm1369, %v465, 0
        %v1701 = vsel %vm1369, %v466, 0
        %v1704 = vsel %vm1369, %v467, 0
        %v1707 = vsel %vm1369, %v468, 0
        %v1710 = vsel %vm1369, %v469, 0
        %v1713 = vsel %vm1369, %v470, 0
        %v1716 = vsel %vm1369, %v471, 0
        %v1719 = vsel %vm1369, %v472, 0
        %1721 = vmatprep.subr.mxu0 0.0
        %1722 = vmatpush1.msra.mxu0 %v1600
        %1723 = vmatprep.subr.mxu0 0.0
        %1724 = vmatpush1.msra.mxu0 %v1601
        %1725 = vmatprep.subr.mxu0 0.0
        %1726 = vmatpush1.msra.mxu0 %v1602
        %1727 = vmatprep.subr.mxu0 0.0
        %1728 = vmatpush1.msra.mxu0 %v1603
        %1729 = vmatprep.subr.mxu0 0.0
        %1730 = vmatpush1.msra.mxu0 %v1604
        %1731 = vmatprep.subr.mxu0 0.0
        %1732 = vmatpush1.msra.mxu0 %v1605
        %1733 = vmatprep.subr.mxu0 0.0
        %1734 = vmatpush1.msra.mxu0 %v1606
        %1735 = vmatprep.subr.mxu0 0.0
        %1736 = vmatpush1.msra.mxu0 %v1607
        %1737 = vmatprep.subr.mxu0 0.0
        %1738 = vmatpush1.msra.mxu0 %v1608
        %1739 = vmatprep.subr.mxu0 0.0
        %1740 = vmatpush1.msra.mxu0 %v1609
        %1741 = vmatprep.subr.mxu0 0.0
        %1742 = vmatpush1.msra.mxu0 %v1610
        %1743 = vmatprep.subr.mxu0 0.0
        %1744 = vmatpush1.msra.mxu0 %v1611
        %1745 = vmatprep.subr.mxu0 0.0
        %1746 = vmatpush1.msra.mxu0 %v1612
        %1747 = vmatprep.subr.mxu0 0.0
        %1748 = vmatpush1.msra.mxu0 %v1613
        %1749 = vmatprep.subr.mxu0 0.0
        %1750 = vmatpush1.msra.mxu0 %v1614
        %1751 = vmatprep.subr.mxu0 0.0
        %1752 = vmatpush1.msra.mxu0 %v1615
        %1753 = vmatprep.subr.mxu0 0.0
        %1754 = vmatpush1.msra.mxu0 %v1616
        %1755 = vmatprep.subr.mxu0 0.0
        %1756 = vmatpush1.msra.mxu0 %v1617
        %1757 = vmatprep.subr.mxu0 0.0
        %1758 = vmatpush1.msra.mxu0 0.0
        %1759 = vmatprep.subr.mxu0 0.0
        %1760 = vmatpush1.msra.mxu0 0.0
        %1761 = vmatprep.subr.mxu0 0.0
        %1762 = vmatpush1.msra.mxu0 0.0
        %1763 = vmatprep.subr.mxu0 0.0
        %1764 = vmatpush1.msra.mxu0 0.0
        %1765 = vmatprep.subr.mxu0 0.0
        %1766 = vmatpush1.msra.mxu0 0.0
        %1767 = vmatprep.subr.mxu0 0.0
        %1768 = vmatpush1.msra.mxu0 0.0
        %1769 = vmatprep.subr.mxu0 0.0
        %1770 = vmatpush1.msra.mxu0 0.0
        %1771 = vmatprep.subr.mxu0 0.0
        %1772 = vmatpush1.msra.mxu0 0.0
        %1773 = vmatprep.subr.mxu0 0.0
        %1774 = vmatpush1.msra.mxu0 0.0
        %1775 = vmatprep.subr.mxu0 0.0
        %1776 = vmatpush1.msra.mxu0 0.0
        %1777 = vmatprep.subr.mxu0 0.0
        %1778 = vmatpush1.msra.mxu0 0.0
        %1779 = vmatprep.subr.mxu0 0.0
        %1780 = vmatpush1.msra.mxu0 0.0
        %1781 = vmatprep.subr.mxu0 0.0
        %1782 = vmatpush1.msra.mxu0 0.0
        %1783 = vmatprep.subr.mxu0 0.0
        %1784 = vmatpush1.msra.mxu0 0.0
        %1785 = vmatprep.mubr.f32.mxu0 %v1626
        %1786 = vmatmul.mubr.f32.gmra.mrb[0].mxu0 %v1568
        %v1787 = vpop.f32.mrb[0].mxu0
        %v1788 = vadd.f32 %v1623, %v1787
        %v1789 = vpop.f32.mrb[0].mxu0
        %1790 = vmatprep.mubr.f32.mxu0 %v1629
        %1791 = vmatmul.mubr.f32.gmra.mrb[0].mxu0 %v1569
        %v1792 = vpop.f32.mrb[0].mxu0
        %v1793 = vadd.f32 %v1623, %v1792
        %v1794 = vpop.f32.mrb[0].mxu0
        %1795 = vmatprep.mubr.f32.mxu0 %v1632
        %1796 = vmatmul.mubr.f32.gmra.mrb[0].mxu0 %v1570
        %v1797 = vpop.f32.mrb[0].mxu0
        %v1798 = vadd.f32 %v1623, %v1797
        %v1799 = vpop.f32.mrb[0].mxu0
        %1800 = vmatprep.mubr.f32.mxu0 %v1635
        %1801 = vmatmul.mubr.f32.gmra.mrb[0].mxu0 %v1571
        %v1802 = vpop.f32.mrb[0].mxu0
        %v1803 = vadd.f32 %v1623, %v1802
        %v1804 = vpop.f32.mrb[0].mxu0
        %1805 = vmatprep.mubr.f32.mxu0 %v1638
        %1806 = vmatmul.mubr.f32.gmra.mrb[0].mxu0 %v1572
        %v1807 = vpop.f32.mrb[0].mxu0
        %v1808 = vadd.f32 %v1623, %v1807
        %v1809 = vpop.f32.mrb[0].mxu0
        %1810 = vmatprep.mubr.f32.mxu0 %v1641
        %1811 = vmatmul.mubr.f32.gmra.mrb[0].mxu0 %v1573
        %v1812 = vpop.f32.mrb[0].mxu0
        %v1813 = vadd.f32 %v1623, %v1812
        %v1814 = vpop.f32.mrb[0].mxu0
        %1815 = vmatprep.mubr.f32.mxu0 %v1644
        %1816 = vmatmul.mubr.f32.gmra.mrb[0].mxu0 %v1574
        %v1817 = vpop.f32.mrb[0].mxu0
        %v1818 = vadd.f32 %v1623, %v1817
        %v1819 = vpop.f32.mrb[0].mxu0
        %1820 = vmatprep.mubr.f32.mxu0 %v1647
        %1821 = vmatmul.mubr.f32.gmra.mrb[0].mxu0 %v1575
        %v1822 = vpop.f32.mrb[0].mxu0
        %v1823 = vadd.f32 %v1623, %v1822
        %v1824 = vpop.f32.mrb[0].mxu0
        %1825 = vmatprep.mubr.f32.mxu0 %v1650
        %1826 = vmatmul.mubr.f32.gmra.mrb[0].mxu0 %v1576
        %v1827 = vpop.f32.mrb[0].mxu0
        %v1828 = vadd.f32 %v1623, %v1827
        %v1829 = vpop.f32.mrb[0].mxu0
        %1830 = vmatprep.mubr.f32.mxu0 %v1653
        %1831 = vmatmul.mubr.f32.gmra.mrb[0].mxu0 %v1577
        %v1832 = vpop.f32.mrb[0].mxu0
        %v1833 = vadd.f32 %v1623, %v1832
        %v1834 = vpop.f32.mrb[0].mxu0
        %1835 = vmatprep.mubr.f32.mxu0 %v1656
        %1836 = vmatmul.mubr.f32.gmra.mrb[0].mxu0 %v1578
        %v1837 = vpop.f32.mrb[0].mxu0
        %v1838 = vadd.f32 %v1623, %v1837
        %v1839 = vpop.f32.mrb[0].mxu0
        %1840 = vmatprep.mubr.f32.mxu0 %v1659
        %1841 = vmatmul.mubr.f32.gmra.mrb[0].mxu0 %v1579
        %v1842 = vpop.f32.mrb[0].mxu0
        %v1843 = vadd.f32 %v1623, %v1842
        %v1844 = vpop.f32.mrb[0].mxu0
        %1845 = vmatprep.mubr.f32.mxu0 %v1662
        %1846 = vmatmul.mubr.f32.gmra.mrb[0].mxu0 %v1580
        %v1847 = vpop.f32.mrb[0].mxu0
        %v1848 = vadd.f32 %v1623, %v1847
        %v1849 = vpop.f32.mrb[0].mxu0
        %1850 = vmatprep.mubr.f32.mxu0 %v1665
        %1851 = vmatmul.mubr.f32.gmra.mrb[0].mxu0 %v1581
        %v1852 = vpop.f32.mrb[0].mxu0
        %v1853 = vadd.f32 %v1623, %v1852
        %v1854 = vpop.f32.mrb[0].mxu0
        %1855 = vmatprep.mubr.f32.mxu0 %v1668
        %1856 = vmatmul.mubr.f32.gmra.mrb[0].mxu0 %v1582
        %v1857 = vpop.f32.mrb[0].mxu0
        %v1858 = vadd.f32 %v1623, %v1857
        %v1859 = vpop.f32.mrb[0].mxu0
        %1860 = vmatprep.mubr.f32.mxu0 %v1671
        %1861 = vmatmul.mubr.f32.gmra.mrb[0].mxu0 %v1583
        %v1862 = vpop.f32.mrb[0].mxu0
        %v1863 = vadd.f32 %v1623, %v1862
        %v1864 = vpop.f32.mrb[0].mxu0
        %1865 = vmatprep.mubr.f32.mxu0 %v1674
        %1866 = vmatmul.mubr.f32.gmra.mrb[0].mxu0 %v1584
        %v1867 = vpop.f32.mrb[0].mxu0
        %v1868 = vadd.f32 %v1623, %v1867
        %v1869 = vpop.f32.mrb[0].mxu0
        %1870 = vmatprep.mubr.f32.mxu0 %v1677
        %1871 = vmatmul.mubr.f32.gmra.mrb[0].mxu0 %v1585
        %v1872 = vpop.f32.mrb[0].mxu0
        %v1873 = vadd.f32 %v1623, %v1872
        %v1874 = vpop.f32.mrb[0].mxu0
        %1875 = vmatprep.mubr.f32.mxu0 %v1680
        %1876 = vmatmul.mubr.f32.gmra.mrb[0].mxu0 %v1586
        %v1877 = vpop.f32.mrb[0].mxu0
        %v1878 = vadd.f32 %v1623, %v1877
        %v1879 = vpop.f32.mrb[0].mxu0
        %1880 = vmatprep.mubr.f32.mxu0 %v1683
        %1881 = vmatmul.mubr.f32.gmra.mrb[0].mxu0 %v1587
        %v1882 = vpop.f32.mrb[0].mxu0
        %v1883 = vadd.f32 %v1623, %v1882
        %v1884 = vpop.f32.mrb[0].mxu0
        %1885 = vmatprep.mubr.f32.mxu0 %v1686
        %1886 = vmatmul.mubr.f32.gmra.mrb[0].mxu0 %v1588
        %v1887 = vpop.f32.mrb[0].mxu0
        %v1888 = vadd.f32 %v1623, %v1887
        %v1889 = vpop.f32.mrb[0].mxu0
        %1890 = vmatprep.mubr.f32.mxu0 %v1689
        %1891 = vmatmul.mubr.f32.gmra.mrb[0].mxu0 %v1589
        %v1892 = vpop.f32.mrb[0].mxu0
        %v1893 = vadd.f32 %v1623, %v1892
        %v1894 = vpop.f32.mrb[0].mxu0
        %1895 = vmatprep.mubr.f32.mxu0 %v1692
        %1896 = vmatmul.mubr.f32.gmra.mrb[0].mxu0 %v1590
        %v1897 = vpop.f32.mrb[0].mxu0
        %v1898 = vadd.f32 %v1623, %v1897
        %v1899 = vpop.f32.mrb[0].mxu0
        %1900 = vmatprep.mubr.f32.mxu0 %v1695
        %1901 = vmatmul.mubr.f32.gmra.mrb[0].mxu0 %v1591
        %v1902 = vpop.f32.mrb[0].mxu0
        %v1903 = vadd.f32 %v1623, %v1902
        %v1904 = vpop.f32.mrb[0].mxu0
        %1905 = vmatprep.mubr.f32.mxu0 %v1698
        %1906 = vmatmul.mubr.f32.gmra.mrb[0].mxu0 %v1592
        %v1907 = vpop.f32.mrb[0].mxu0
        %v1908 = vadd.f32 %v1623, %v1907
        %v1909 = vpop.f32.mrb[0].mxu0
        %1910 = vmatprep.mubr.f32.mxu0 %v1701
        %1911 = vmatmul.mubr.f32.gmra.mrb[0].mxu0 %v1593
        %v1912 = vpop.f32.mrb[0].mxu0
        %v1913 = vadd.f32 %v1623, %v1912
        %v1914 = vpop.f32.mrb[0].mxu0
        %1915 = vmatprep.mubr.f32.mxu0 %v1704
        %1916 = vmatmul.mubr.f32.gmra.mrb[0].mxu0 %v1594
        %v1917 = vpop.f32.mrb[0].mxu0
        %v1918 = vadd.f32 %v1623, %v1917
        %v1919 = vpop.f32.mrb[0].mxu0
        %1920 = vmatprep.mubr.f32.mxu0 %v1707
        %1921 = vmatmul.mubr.f32.gmra.mrb[0].mxu0 %v1595
        %v1922 = vpop.f32.mrb[0].mxu0
        %v1923 = vadd.f32 %v1623, %v1922
        %v1924 = vpop.f32.mrb[0].mxu0
        %1925 = vmatprep.mubr.f32.mxu0 %v1710
        %1926 = vmatmul.mubr.f32.gmra.mrb[0].mxu0 %v1596
        %v1927 = vpop.f32.mrb[0].mxu0
        %v1928 = vadd.f32 %v1623, %v1927
        %v1929 = vpop.f32.mrb[0].mxu0
        %1930 = vmatprep.mubr.f32.mxu0 %v1713
        %1931 = vmatmul.mubr.f32.gmra.mrb[0].mxu0 %v1597
        %v1932 = vpop.f32.mrb[0].mxu0
        %v1933 = vadd.f32 %v1623, %v1932
        %v1934 = vpop.f32.mrb[0].mxu0
        %1935 = vmatprep.mubr.f32.mxu0 %v1716
        %1936 = vmatmul.mubr.f32.gmra.mrb[0].mxu0 %v1598
        %v1937 = vpop.f32.mrb[0].mxu0
        %v1938 = vadd.f32 %v1623, %v1937
        %v1939 = vpop.f32.mrb[0].mxu0
        %1940 = vmatprep.mubr.f32.mxu0 %v1719
        %1941 = vmatmul.mubr.f32.gmra.mrb[0].mxu0 %v1599
        %v1942 = vpop.f32.mrb[0].mxu0
        %v1943 = vadd.f32 %v1623, %v1942
        %v1944 = vpop.f32.mrb[0].mxu0
        %1945 = vdwg.mxu0
        %1946 = vxpose.xlu0.b32.start [1/16] %v1788, 128
        %1947 = vxpose.xlu0.b32.cont [2/16] %v1793, 128
        %1948 = vxpose.xlu0.b32.cont [3/16] %v1798, 128
        %1949 = vxpose.xlu0.b32.cont [4/16] %v1803, 128
        %1950 = vxpose.xlu0.b32.cont [5/16] %v1808, 128
        %1951 = vxpose.xlu0.b32.cont [6/16] %v1813, 128
        %1952 = vxpose.xlu0.b32.cont [7/16] %v1818, 128
        %1953 = vxpose.xlu0.b32.cont [8/16] %v1823, 128
        %1954 = vxpose.xlu0.b32.cont [9/16] %v1828, 128
        %1955 = vxpose.xlu0.b32.cont [10/16] %v1833, 128
        %1956 = vxpose.xlu0.b32.cont [11/16] %v1838, 128
        %1957 = vxpose.xlu0.b32.cont [12/16] %v1843, 128
        %1958 = vxpose.xlu0.b32.cont [13/16] %v1848, 128
        %1959 = vxpose.xlu0.b32.cont [14/16] %v1853, 128
        %1960 = vxpose.xlu0.b32.cont [15/16] %v1858, 128
        %1961 = vxpose.xlu0.b32.end [16/16] %v1863, 128
        %v1962 = vpop.trf.xlu0
        %v1963 = vpop.trf.xlu0
        %v1964 = vpop.trf.xlu0
        %v1965 = vpop.trf.xlu0
        %v1966 = vpop.trf.xlu0
        %v1967 = vpop.trf.xlu0
        %v1968 = vpop.trf.xlu0
        %v1969 = vpop.trf.xlu0
        %v1970 = vpop.trf.xlu0
        %v1971 = vpop.trf.xlu0
        %v1972 = vpop.trf.xlu0
        %v1973 = vpop.trf.xlu0
        %v1974 = vpop.trf.xlu0
        %v1975 = vpop.trf.xlu0
        %v1976 = vpop.trf.xlu0
        %v1977 = vpop.trf.xlu0
        %1978 = vxpose.xlu0.b32.start [1/16] %v1868, 128
        %1979 = vxpose.xlu0.b32.cont [2/16] %v1873, 128
        %1980 = vxpose.xlu0.b32.cont [3/16] %v1878, 128
        %1981 = vxpose.xlu0.b32.cont [4/16] %v1883, 128
        %1982 = vxpose.xlu0.b32.cont [5/16] %v1888, 128
        %1983 = vxpose.xlu0.b32.cont [6/16] %v1893, 128
        %1984 = vxpose.xlu0.b32.cont [7/16] %v1898, 128
        %1985 = vxpose.xlu0.b32.cont [8/16] %v1903, 128
        %1986 = vxpose.xlu0.b32.cont [9/16] %v1908, 128
        %1987 = vxpose.xlu0.b32.cont [10/16] %v1913, 128
        %1988 = vxpose.xlu0.b32.cont [11/16] %v1918, 128
        %1989 = vxpose.xlu0.b32.cont [12/16] %v1923, 128
        %1990 = vxpose.xlu0.b32.cont [13/16] %v1928, 128
        %1991 = vxpose.xlu0.b32.cont [14/16] %v1933, 128
        %1992 = vxpose.xlu0.b32.cont [15/16] %v1938, 128
        %1993 = vxpose.xlu0.b32.end [16/16] %v1943, 128
        %v1994 = vpop.trf.xlu0
        %v1995 = vpop.trf.xlu0
        %v1996 = vpop.trf.xlu0
        %v1997 = vpop.trf.xlu0
        %v1998 = vpop.trf.xlu0
        %v1999 = vpop.trf.xlu0
        %v2000 = vpop.trf.xlu0
        %v2001 = vpop.trf.xlu0
        %v2002 = vpop.trf.xlu0
        %v2003 = vpop.trf.xlu0
        %v2004 = vpop.trf.xlu0
        %v2005 = vpop.trf.xlu0
        %v2006 = vpop.trf.xlu0
        %v2007 = vpop.trf.xlu0
        %v2008 = vpop.trf.xlu0
        %v2009 = vpop.trf.xlu0
        %2010 = vst [vmem:[%s177] sm:$0xff] %v1962
        %2011 = vst [vmem:[%s177 + $0x8] sm:$0xff] %v1994
        %2012 = vst [vmem:[%s177 + $0x10] sm:$0xff] %v1963
        %2013 = vst [vmem:[%s177 + $0x18] sm:$0xff] %v1995
        %2014 = vst [vmem:[%s177 + $0x20] sm:$0xff] %v1964
        %2015 = vst [vmem:[%s177 + $0x28] sm:$0xff] %v1996
        %2016 = vst [vmem:[%s177 + $0x30] sm:$0xff] %v1965
        %2017 = vst [vmem:[%s177 + $0x38] sm:$0xff] %v1997
        %s2018 = sand.u32 %s107, 1
        %s2019 = scalar_lea.sflag [#allocation3], %s2018
        %s2020 = sand.u32 %s107, 1
        %s2021 = smul.addr %s2020, 64
        %s2022 = scalar_lea.vmem [#allocation2], %s2021
        // Predicated region
        $region33: #{tpu_custom_call.1} parent=31 // pred_check
          %p2023 = pneg %p117
        $region34: #{tpu_custom_call.1} parent=31 // pred_check_branch
          %2025 = sbr.rel (%p2023) target = $region36
        $region35: #{tpu_custom_call.1} parent=31 // pred_region
          %s2027 = ssub.s32 1024, 1024
          %2028 = vsyncadd %s2019, %s2027
          %s2029 = smul.addr %s22, 8
          %s2030 = smul.addr %s21, 8
          %s2031 = sadd.s32 %s2029, %s2030
          %s2032 = smul.addr %s2031, 128
          %s2033 = scalar_lea.hbm %s3, %s2032
          %s2034 = sshll.u32 %s2022, 4
          %s2035 = int_to_ptr.vmem [resolvable:$true] %s2034
          %2040 = dma.vmem_to_hbm [thread:$0]  %s2035, 1024, %s2033, %s2019, 256, 256, 16
        $region36: #{tpu_custom_call.1} parent=31 // pred_fallthru
          _
      $region32: #{tpu_custom_call.1} parent=5 // pred_fallthru
        _
      %p2041 = scmp.le.s32.totalorder 2, %s12
      // Predicated region
      $region37: #{tpu_custom_call.1} parent=5 // pred_check
        %p2042 = pneg %p2041
      $region38: #{tpu_custom_call.1} parent=5 // pred_check_branch
        %2044 = sbr.rel (%p2042) target = $region40
      $region39: #{tpu_custom_call.1} parent=5 // pred_region
        %s2045 = ssub.s32 %s12, 2
        // Predicated region
        $region41: #{tpu_custom_call.1} parent=39 // pred_check
          %p2046 = pneg %p123
        $region42: #{tpu_custom_call.1} parent=39 // pred_check_branch
          %2048 = sbr.rel (%p2046) target = $region44
        $region43: #{tpu_custom_call.1} parent=39 // pred_region
          %s2049 = sand.u32 %s108, 1
          %s2050 = scalar_lea.sflag [#allocation3], %s2049
          %s2051 = sand.u32 %s108, 1
          %s2052 = smul.addr %s2051, 64
          %s2053 = scalar_lea.vmem [#allocation2], %s2052
          %2054 = dma.done %s2050, 1024
        $region44: #{tpu_custom_call.1} parent=39 // pred_fallthru
          _
      $region40: #{tpu_custom_call.1} parent=5 // pred_fallthru
        _
    $region6: #{tpu_custom_call.1} parent=1 // loop_footer
      %s16 = sadd.s32 1, %s12
    $region7: #{tpu_custom_call.1} parent=1 // loop_footer_branch
      %11 = sbr.rel target = $region3
    $region8: #{tpu_custom_call.1} parent=1 // loop_exit
      _
    %2055 = vsyncpa [#allocation3], 1
    %s2056 = scalar_lea.sflag [#allocation3], 1
    %2057 = vsyncpa %s2056, 1

</llo_original>
